<compile_context>
chip_gen: v5e
topology: v5e:2x2
jax: 0.10.0
libtpu: 0.0.40
codegen_flags: <defaults>
</compile_context>

<pallas_src>
import jax
import jax.numpy as jnp
from jax.experimental import pallas as pl
from jax.experimental.pallas import tpu as pltpu


_LANE = 128   # TPU lane width: Cout is padded up to this for lane-dense stores
_WPAD = 8     # left zero-pad of the conv-2 scratch: keeps the interior store
              # sublane-aligned while still providing the 1-pixel conv padding


# ----------------------------- Pallas kernel ------------------------------ #
def _conv2d_down_kernel(x_ref, w1_ref, b1_ref, w2_ref, b2_ref,
                        a1_ref, a2_ref, o_ref, mid_ref):
    Ho, Wo, Cp = o_ref.shape
    cdt = w1_ref.dtype                      # bf16 compute dtype for the MXU

    # ---- stage 1: stride-2 3x3 conv == 2x2 valid conv on space-to-depth ----
    acc1 = jnp.zeros((Ho * Wo, Cp), jnp.float32)
    for dh in range(2):
        for dw in range(2):
            a = x_ref[dh:dh + Ho, dw:dw + Wo, :]
            # collapse (Ho, Wo, K) -> (Ho*Wo, K) on the f32 (8-row sublane)
            # layout, then hand bf16 to the MXU.
            a = a.astype(jnp.float32).reshape(Ho * Wo, -1).astype(cdt)
            acc1 = acc1 + jnp.dot(a, w1_ref[dh, dw],
                                  preferred_element_type=jnp.float32)
    acc1 = acc1 + b1_ref[...]                         # (1, Cp) broadcast
    h1 = jnp.where(acc1 > 0, acc1, a1_ref[0] * acc1)  # PReLU (scalar alpha)

    # ---- keep the intermediate resident in VMEM; zero border = conv2 pad ---
    mid_ref[...] = jnp.zeros_like(mid_ref)
    mid_ref[1:Ho + 1, _WPAD:_WPAD + Wo, :] = h1.reshape(Ho, Wo, Cp)

    # ---- stage 2: 3x3 stride-1 conv on the resident activation -------------
    acc2 = jnp.zeros((Ho * Wo, Cp), jnp.float32)
    for kh in range(3):
        for kw in range(3):
            a = mid_ref[kh:kh + Ho, _WPAD - 1 + kw:_WPAD - 1 + kw + Wo, :]
            a = a.reshape(Ho * Wo, Cp).astype(cdt)
            acc2 = acc2 + jnp.dot(a, w2_ref[kh, kw],
                                  preferred_element_type=jnp.float32)
    acc2 = acc2 + b2_ref[...]
    o2 = jnp.where(acc2 > 0, acc2, a2_ref[0] * acc2)
    o_ref[...] = o2.reshape(Ho, Wo, Cp).astype(o_ref.dtype)


# ------------------------------- wrapper ----------------------------------- #
def _round_up(v, m):
    return (v + m - 1) // m * m


def conv2d_down(x, params, *, compute_dtype=jnp.bfloat16):
    """Forward pass of Conv2dDown. x: (N, Cin, H, W) -> (N, Cout, H//2, W//2)."""
    N, Cin, H, W = x.shape
    Cout, _, k, _ = params["w1"].shape
    assert k == 3 and params["w2"].shape[-1] == 3, "kernel specialized to 3x3"
    Cp = _round_up(Cout, _LANE)

    Ho = (H + 2 - 3) // 2 + 1              # PyTorch Conv2d(k=3, s=2, p=1)
    Wo = (W + 2 - 3) // 2 + 1
    Hs, Ws = Ho + 1, Wo + 1                # space-to-depth grid size

    # --- one cheap layout pass: NCHW->NHWC, pad, space-to-depth (no im2col) --
    x_nhwc = jnp.transpose(x, (0, 2, 3, 1))
    xp = jnp.pad(x_nhwc,
                 ((0, 0), (1, 2 * Hs - H - 1), (1, 2 * Ws - W - 1), (0, 0)))
    s2d = (xp.reshape(N, Hs, 2, Ws, 2, Cin)
             .transpose(0, 1, 3, 2, 4, 5)
             .reshape(N, Hs, Ws, 4 * Cin)
             .astype(compute_dtype))

    # --- weights: OIHW -> HWIO, pad Cout to the lane width -------------------
    w1 = jnp.transpose(params["w1"], (2, 3, 1, 0))             # (3,3,Cin,Cout)
    w1 = jnp.pad(w1, ((0, 1), (0, 1), (0, 0), (0, Cp - Cout)))  # zero taps k==3
    # fold the two stride-2 phases into the contraction dim: (dh, dw, 4Cin, Cp)
    w1_s2d = (w1.reshape(2, 2, 2, 2, Cin, Cp)
                .transpose(0, 2, 1, 3, 4, 5)
                .reshape(2, 2, 4 * Cin, Cp)
                .astype(compute_dtype))

    w2 = jnp.transpose(params["w2"], (2, 3, 1, 0))             # (3,3,Cout,Cout)
    w2 = jnp.pad(w2, ((0, 0), (0, 0), (0, Cp - Cout), (0, Cp - Cout)))
    w2 = w2.astype(compute_dtype)

    b1 = jnp.pad(params["b1"], (0, Cp - Cout)).reshape(1, Cp).astype(jnp.float32)
    b2 = jnp.pad(params["b2"], (0, Cp - Cout)).reshape(1, Cp).astype(jnp.float32)
    a1 = jnp.asarray(params["a1"], jnp.float32).reshape(1)
    a2 = jnp.asarray(params["a2"], jnp.float32).reshape(1)

    itemsize = jnp.dtype(compute_dtype).itemsize
    cost = pl.CostEstimate(
        flops=2 * N * Ho * Wo * 9 * (Cin * Cp + Cp * Cp),
        transcendentals=0,
        bytes_accessed=int(s2d.size * itemsize + w1_s2d.size * itemsize
                           + w2.size * itemsize + N * Ho * Wo * Cp * 4),
    )

    out = pl.pallas_call(
        _conv2d_down_kernel,
        out_shape=jax.ShapeDtypeStruct((N, Ho, Wo, Cp), jnp.float32),
        grid_spec=pltpu.PrefetchScalarGridSpec(
            num_scalar_prefetch=0,
            grid=(N,),
            in_specs=[
                pl.BlockSpec((None, Hs, Ws, 4 * Cin), lambda n: (n, 0, 0, 0)),
                pl.BlockSpec((2, 2, 4 * Cin, Cp), lambda n: (0, 0, 0, 0)),
                pl.BlockSpec((1, Cp), lambda n: (0, 0)),
                pl.BlockSpec((3, 3, Cp, Cp), lambda n: (0, 0, 0, 0)),
                pl.BlockSpec((1, Cp), lambda n: (0, 0)),
                pl.BlockSpec(memory_space=pltpu.MemorySpace.SMEM),   # alpha1
                pl.BlockSpec(memory_space=pltpu.MemorySpace.SMEM),   # alpha2
            ],
            out_specs=pl.BlockSpec((None, Ho, Wo, Cp), lambda n: (n, 0, 0, 0)),
            scratch_shapes=[
                pltpu.VMEM((Ho + 2, Wo + _WPAD + 1, Cp), jnp.float32),
            ],
        ),
        compiler_params=pltpu.CompilerParams(
            dimension_semantics=("parallel",)),
        cost_estimate=cost,
    )(s2d, w1_s2d, b1, w2, b2, a1, a2)

    # drop the channel padding, back to NCHW for the PyTorch-facing API
    return jnp.transpose(out[..., :Cout], (0, 3, 1, 2))


# ------------------------------ params / ref -------------------------------- #
def init_params(key, in_planes, out_planes, k=3):
    k1, k2, k3, k4 = jax.random.split(key, 4)
    scale1 = 1.0 / jnp.sqrt(in_planes * k * k)
    scale2 = 1.0 / jnp.sqrt(out_planes * 3 * 3)
    return {
        "w1": jax.random.uniform(k1, (out_planes, in_planes, k, k),
                                 jnp.float32, -scale1, scale1),
        "b1": jax.random.uniform(k2, (out_planes,), jnp.float32,
                                 -scale1, scale1),
        "a1": jnp.array(0.25, jnp.float32),     # nn.PReLU() default
        "w2": jax.random.uniform(k3, (out_planes, out_planes, 3, 3),
                                 jnp.float32, -scale2, scale2),
        "b2": jax.random.uniform(k4, (out_planes,), jnp.float32,
                                 -scale2, scale2),
        "a2": jnp.array(0.25, jnp.float32),
    }


def _reference(x, params):
    def conv(x, w, b, stride, pad):
        y = jax.lax.conv_general_dilated(
            x, w, window_strides=(stride, stride),
            padding=[(pad, pad), (pad, pad)],
            dimension_numbers=("NCHW", "OIHW", "NCHW"))
        return y + b.reshape(1, -1, 1, 1)

    def prelu(x, a):
        return jnp.where(x > 0, x, a * x)

    y = prelu(conv(x, params["w1"], params["b1"], 2, 1), params["a1"])
    y = prelu(conv(y, params["w2"], params["b2"], 1, 1), params["a2"])
    return y


if __name__ == "__main__":
    key = jax.random.PRNGKey(0)
    kx, kp = jax.random.split(key)

    in_planes, out_planes = 4, 8
    x = jax.random.normal(kx, (2, in_planes, 16, 16), jnp.float32)
    params = init_params(kp, in_planes, out_planes)

    fwd = jax.jit(conv2d_down)
    out = jax.block_until_ready(fwd(x, params))
    ref = jax.block_until_ready(_reference(x, params))

    assert out.shape == (2, out_planes, 8, 8), out.shape
    # bf16 matmul operands (f32 accumulation) vs f32 reference -> loosened tol.
    err = float(jnp.max(jnp.abs(out - ref)))
    assert jnp.allclose(out, ref, atol=3e-2, rtol=3e-2), err
    print("KERNEL_OK")
</pallas_src>

<mosaic_0001>
module attributes {stable_mosaic.version = 11 : i64} {
  func.func @_conv2d_down_kernel(%arg0: i32, %arg1: memref<1x9x9x16xbf16, #tpu.memory_space<vmem>>, %arg2: memref<2x2x16x128xbf16, #tpu.memory_space<vmem>>, %arg3: memref<1x128xf32, #tpu.memory_space<vmem>>, %arg4: memref<3x3x128x128xbf16, #tpu.memory_space<vmem>>, %arg5: memref<1x128xf32, #tpu.memory_space<vmem>>, %arg6: memref<1xf32, #tpu.memory_space<smem>>, %arg7: memref<1xf32, #tpu.memory_space<smem>>, %arg8: memref<1x8x8x128xf32, #tpu.memory_space<vmem>>, %arg9: memref<10x17x128xf32, #tpu.memory_space<vmem>>) attributes {dimension_semantics = [#tpu.dimension_semantics<parallel>], iteration_bounds = array<i64: 2>, scalar_prefetch = 0 : i64, scratch_operands = 1 : i64, tpu.core_type = #tpu.core_type<tc>, window_params = [{transform_indices = @transform_0, window_bounds = array<i64: 1, 9, 9, 16>}, {pipeline_mode = #tpu.pipeline_mode<synchronous>, transform_indices = @transform_1, window_bounds = array<i64: 2, 2, 16, 128>}, {pipeline_mode = #tpu.pipeline_mode<synchronous>, transform_indices = @transform_2, window_bounds = array<i64: 1, 128>}, {pipeline_mode = #tpu.pipeline_mode<synchronous>, transform_indices = @transform_3, window_bounds = array<i64: 3, 3, 128, 128>}, {pipeline_mode = #tpu.pipeline_mode<synchronous>, transform_indices = @transform_4, window_bounds = array<i64: 1, 128>}, {transform_indices = @transform_5, window_bounds = array<i64: 1>}, {transform_indices = @transform_6, window_bounds = array<i64: 1>}, {transform_indices = @transform_7, window_bounds = array<i64: 1, 8, 8, 128>}]} {
    %cst = arith.constant 0.000000e+00 : f32
    %0 = vector.broadcast %cst : f32 to vector<64x128xf32>
    %c0 = arith.constant 0 : index
    %c0_0 = arith.constant 0 : index
    %c0_1 = arith.constant 0 : index
    %c0_2 = arith.constant 0 : index
    %1 = vector.load %arg1[%c0, %c0_0, %c0_1, %c0_2] : memref<1x9x9x16xbf16, #tpu.memory_space<vmem>>, vector<1x8x8x16xbf16>
    %2 = vector.shape_cast %1 : vector<1x8x8x16xbf16> to vector<8x8x16xbf16>
    %3 = arith.extf %2 : vector<8x8x16xbf16> to vector<8x8x16xf32>
    %4 = vector.shape_cast %3 : vector<8x8x16xf32> to vector<64x16xf32>
    %5 = arith.truncf %4 : vector<64x16xf32> to vector<64x16xbf16>
    %c0_3 = arith.constant 0 : index
    %c0_4 = arith.constant 0 : index
    %c0_5 = arith.constant 0 : index
    %c0_6 = arith.constant 0 : index
    %6 = vector.load %arg2[%c0_3, %c0_4, %c0_5, %c0_6] : memref<2x2x16x128xbf16, #tpu.memory_space<vmem>>, vector<1x1x16x128xbf16>
    %7 = vector.shape_cast %6 : vector<1x1x16x128xbf16> to vector<16x128xbf16>
    %cst_7 = arith.constant dense<0.000000e+00> : vector<64x128xf32>
    %8 = tpu.matmul %5, %7, %cst_7 {dimension_numbers = #tpu.dot_dimension_numbers<[1], [0], [0], [1], [0, 0, 1, 1], [], []>} : vector<64x16xbf16>, vector<16x128xbf16>, vector<64x128xf32> -> vector<64x128xf32>
    %9 = arith.addf %0, %8 : vector<64x128xf32>
    %c0_8 = arith.constant 0 : index
    %c0_9 = arith.constant 0 : index
    %c1 = arith.constant 1 : index
    %c0_10 = arith.constant 0 : index
    %10 = vector.load %arg1[%c0_8, %c0_9, %c1, %c0_10] : memref<1x9x9x16xbf16, #tpu.memory_space<vmem>>, vector<1x8x8x16xbf16>
    %11 = vector.shape_cast %10 : vector<1x8x8x16xbf16> to vector<8x8x16xbf16>
    %12 = arith.extf %11 : vector<8x8x16xbf16> to vector<8x8x16xf32>
    %13 = vector.shape_cast %12 : vector<8x8x16xf32> to vector<64x16xf32>
    %14 = arith.truncf %13 : vector<64x16xf32> to vector<64x16xbf16>
    %c0_11 = arith.constant 0 : index
    %c1_12 = arith.constant 1 : index
    %c0_13 = arith.constant 0 : index
    %c0_14 = arith.constant 0 : index
    %15 = vector.load %arg2[%c0_11, %c1_12, %c0_13, %c0_14] : memref<2x2x16x128xbf16, #tpu.memory_space<vmem>>, vector<1x1x16x128xbf16>
    %16 = vector.shape_cast %15 : vector<1x1x16x128xbf16> to vector<16x128xbf16>
    %cst_15 = arith.constant dense<0.000000e+00> : vector<64x128xf32>
    %17 = tpu.matmul %14, %16, %cst_15 {dimension_numbers = #tpu.dot_dimension_numbers<[1], [0], [0], [1], [0, 0, 1, 1], [], []>} : vector<64x16xbf16>, vector<16x128xbf16>, vector<64x128xf32> -> vector<64x128xf32>
    %18 = arith.addf %9, %17 : vector<64x128xf32>
    %c0_16 = arith.constant 0 : index
    %c1_17 = arith.constant 1 : index
    %c0_18 = arith.constant 0 : index
    %c0_19 = arith.constant 0 : index
    %19 = vector.load %arg1[%c0_16, %c1_17, %c0_18, %c0_19] : memref<1x9x9x16xbf16, #tpu.memory_space<vmem>>, vector<1x8x8x16xbf16>
    %20 = vector.shape_cast %19 : vector<1x8x8x16xbf16> to vector<8x8x16xbf16>
    %21 = arith.extf %20 : vector<8x8x16xbf16> to vector<8x8x16xf32>
    %22 = vector.shape_cast %21 : vector<8x8x16xf32> to vector<64x16xf32>
    %23 = arith.truncf %22 : vector<64x16xf32> to vector<64x16xbf16>
    %c1_20 = arith.constant 1 : index
    %c0_21 = arith.constant 0 : index
    %c0_22 = arith.constant 0 : index
    %c0_23 = arith.constant 0 : index
    %24 = vector.load %arg2[%c1_20, %c0_21, %c0_22, %c0_23] : memref<2x2x16x128xbf16, #tpu.memory_space<vmem>>, vector<1x1x16x128xbf16>
    %25 = vector.shape_cast %24 : vector<1x1x16x128xbf16> to vector<16x128xbf16>
    %cst_24 = arith.constant dense<0.000000e+00> : vector<64x128xf32>
    %26 = tpu.matmul %23, %25, %cst_24 {dimension_numbers = #tpu.dot_dimension_numbers<[1], [0], [0], [1], [0, 0, 1, 1], [], []>} : vector<64x16xbf16>, vector<16x128xbf16>, vector<64x128xf32> -> vector<64x128xf32>
    %27 = arith.addf %18, %26 : vector<64x128xf32>
    %c0_25 = arith.constant 0 : index
    %c1_26 = arith.constant 1 : index
    %c1_27 = arith.constant 1 : index
    %c0_28 = arith.constant 0 : index
    %28 = vector.load %arg1[%c0_25, %c1_26, %c1_27, %c0_28] : memref<1x9x9x16xbf16, #tpu.memory_space<vmem>>, vector<1x8x8x16xbf16>
    %29 = vector.shape_cast %28 : vector<1x8x8x16xbf16> to vector<8x8x16xbf16>
    %30 = arith.extf %29 : vector<8x8x16xbf16> to vector<8x8x16xf32>
    %31 = vector.shape_cast %30 : vector<8x8x16xf32> to vector<64x16xf32>
    %32 = arith.truncf %31 : vector<64x16xf32> to vector<64x16xbf16>
    %c1_29 = arith.constant 1 : index
    %c1_30 = arith.constant 1 : index
    %c0_31 = arith.constant 0 : index
    %c0_32 = arith.constant 0 : index
    %33 = vector.load %arg2[%c1_29, %c1_30, %c0_31, %c0_32] : memref<2x2x16x128xbf16, #tpu.memory_space<vmem>>, vector<1x1x16x128xbf16>
    %34 = vector.shape_cast %33 : vector<1x1x16x128xbf16> to vector<16x128xbf16>
    %cst_33 = arith.constant dense<0.000000e+00> : vector<64x128xf32>
    %35 = tpu.matmul %32, %34, %cst_33 {dimension_numbers = #tpu.dot_dimension_numbers<[1], [0], [0], [1], [0, 0, 1, 1], [], []>} : vector<64x16xbf16>, vector<16x128xbf16>, vector<64x128xf32> -> vector<64x128xf32>
    %36 = arith.addf %27, %35 : vector<64x128xf32>
    %c0_34 = arith.constant 0 : index
    %c0_35 = arith.constant 0 : index
    %37 = vector.load %arg3[%c0_34, %c0_35] : memref<1x128xf32, #tpu.memory_space<vmem>>, vector<1x128xf32>
    %38 = vector.broadcast %37 : vector<1x128xf32> to vector<64x128xf32>
    %39 = arith.addf %36, %38 : vector<64x128xf32>
    %cst_36 = arith.constant 0.000000e+00 : f32
    %40 = vector.broadcast %cst_36 : f32 to vector<64x128xf32>
    %41 = arith.cmpf ogt, %39, %40 : vector<64x128xf32>
    %c0_37 = arith.constant 0 : index
    %42 = memref.load %arg6[%c0_37] : memref<1xf32, #tpu.memory_space<smem>>
    %43 = vector.broadcast %42 : f32 to vector<64x128xf32>
    %44 = arith.mulf %43, %39 : vector<64x128xf32>
    %45 = arith.select %41, %39, %44 : vector<64x128xi1>, vector<64x128xf32>
    %cst_38 = arith.constant 0.000000e+00 : f32
    %46 = vector.broadcast %cst_38 : f32 to vector<10x17x128xf32>
    %c0_39 = arith.constant 0 : index
    %c0_40 = arith.constant 0 : index
    %c0_41 = arith.constant 0 : index
    %47 = vector.load %arg9[%c0_39, %c0_40, %c0_41] : memref<10x17x128xf32, #tpu.memory_space<vmem>>, vector<10x17x128xf32>
    tpu.vector_store %arg9[%c0_39, %c0_40, %c0_41], %46 {strides = array<i32>} : memref<10x17x128xf32, #tpu.memory_space<vmem>>, vector<10x17x128xf32>,
    %48 = vector.shape_cast %45 : vector<64x128xf32> to vector<8x8x128xf32>
    %c1_42 = arith.constant 1 : index
    %c8 = arith.constant 8 : index
    %c0_43 = arith.constant 0 : index
    %49 = vector.load %arg9[%c1_42, %c8, %c0_43] : memref<10x17x128xf32, #tpu.memory_space<vmem>>, vector<8x8x128xf32>
    tpu.vector_store %arg9[%c1_42, %c8, %c0_43], %48 {strides = array<i32>} : memref<10x17x128xf32, #tpu.memory_space<vmem>>, vector<8x8x128xf32>,
    %cst_44 = arith.constant 0.000000e+00 : f32
    %50 = vector.broadcast %cst_44 : f32 to vector<64x128xf32>
    %c0_45 = arith.constant 0 : index
    %c7 = arith.constant 7 : index
    %c0_46 = arith.constant 0 : index
    %51 = vector.load %arg9[%c0_45, %c7, %c0_46] : memref<10x17x128xf32, #tpu.memory_space<vmem>>, vector<8x8x128xf32>
    %52 = vector.shape_cast %51 : vector<8x8x128xf32> to vector<64x128xf32>
    %53 = arith.truncf %52 : vector<64x128xf32> to vector<64x128xbf16>
    %c0_47 = arith.constant 0 : index
    %c0_48 = arith.constant 0 : index
    %c0_49 = arith.constant 0 : index
    %c0_50 = arith.constant 0 : index
    %54 = vector.load %arg4[%c0_47, %c0_48, %c0_49, %c0_50] : memref<3x3x128x128xbf16, #tpu.memory_space<vmem>>, vector<1x1x128x128xbf16>
    %55 = vector.shape_cast %54 : vector<1x1x128x128xbf16> to vector<128x128xbf16>
    %cst_51 = arith.constant dense<0.000000e+00> : vector<64x128xf32>
    %56 = tpu.matmul %53, %55, %cst_51 {dimension_numbers = #tpu.dot_dimension_numbers<[1], [0], [0], [1], [0, 0, 1, 1], [], []>} : vector<64x128xbf16>, vector<128x128xbf16>, vector<64x128xf32> -> vector<64x128xf32>
    %57 = arith.addf %50, %56 : vector<64x128xf32>
    %c0_52 = arith.constant 0 : index
    %c8_53 = arith.constant 8 : index
    %c0_54 = arith.constant 0 : index
    %58 = vector.load %arg9[%c0_52, %c8_53, %c0_54] : memref<10x17x128xf32, #tpu.memory_space<vmem>>, vector<8x8x128xf32>
    %59 = vector.shape_cast %58 : vector<8x8x128xf32> to vector<64x128xf32>
    %60 = arith.truncf %59 : vector<64x128xf32> to vector<64x128xbf16>
    %c0_55 = arith.constant 0 : index
    %c1_56 = arith.constant 1 : index
    %c0_57 = arith.constant 0 : index
    %c0_58 = arith.constant 0 : index
    %61 = vector.load %arg4[%c0_55, %c1_56, %c0_57, %c0_58] : memref<3x3x128x128xbf16, #tpu.memory_space<vmem>>, vector<1x1x128x128xbf16>
    %62 = vector.shape_cast %61 : vector<1x1x128x128xbf16> to vector<128x128xbf16>
    %cst_59 = arith.constant dense<0.000000e+00> : vector<64x128xf32>
    %63 = tpu.matmul %60, %62, %cst_59 {dimension_numbers = #tpu.dot_dimension_numbers<[1], [0], [0], [1], [0, 0, 1, 1], [], []>} : vector<64x128xbf16>, vector<128x128xbf16>, vector<64x128xf32> -> vector<64x128xf32>
    %64 = arith.addf %57, %63 : vector<64x128xf32>
    %c0_60 = arith.constant 0 : index
    %c9 = arith.constant 9 : index
    %c0_61 = arith.constant 0 : index
    %65 = vector.load %arg9[%c0_60, %c9, %c0_61] : memref<10x17x128xf32, #tpu.memory_space<vmem>>, vector<8x8x128xf32>
    %66 = vector.shape_cast %65 : vector<8x8x128xf32> to vector<64x128xf32>
    %67 = arith.truncf %66 : vector<64x128xf32> to vector<64x128xbf16>
    %c0_62 = arith.constant 0 : index
    %c2 = arith.constant 2 : index
    %c0_63 = arith.constant 0 : index
    %c0_64 = arith.constant 0 : index
    %68 = vector.load %arg4[%c0_62, %c2, %c0_63, %c0_64] : memref<3x3x128x128xbf16, #tpu.memory_space<vmem>>, vector<1x1x128x128xbf16>
    %69 = vector.shape_cast %68 : vector<1x1x128x128xbf16> to vector<128x128xbf16>
    %cst_65 = arith.constant dense<0.000000e+00> : vector<64x128xf32>
    %70 = tpu.matmul %67, %69, %cst_65 {dimension_numbers = #tpu.dot_dimension_numbers<[1], [0], [0], [1], [0, 0, 1, 1], [], []>} : vector<64x128xbf16>, vector<128x128xbf16>, vector<64x128xf32> -> vector<64x128xf32>
    %71 = arith.addf %64, %70 : vector<64x128xf32>
    %c1_66 = arith.constant 1 : index
    %c7_67 = arith.constant 7 : index
    %c0_68 = arith.constant 0 : index
    %72 = vector.load %arg9[%c1_66, %c7_67, %c0_68] : memref<10x17x128xf32, #tpu.memory_space<vmem>>, vector<8x8x128xf32>
    %73 = vector.shape_cast %72 : vector<8x8x128xf32> to vector<64x128xf32>
    %74 = arith.truncf %73 : vector<64x128xf32> to vector<64x128xbf16>
    %c1_69 = arith.constant 1 : index
    %c0_70 = arith.constant 0 : index
    %c0_71 = arith.constant 0 : index
    %c0_72 = arith.constant 0 : index
    %75 = vector.load %arg4[%c1_69, %c0_70, %c0_71, %c0_72] : memref<3x3x128x128xbf16, #tpu.memory_space<vmem>>, vector<1x1x128x128xbf16>
    %76 = vector.shape_cast %75 : vector<1x1x128x128xbf16> to vector<128x128xbf16>
    %cst_73 = arith.constant dense<0.000000e+00> : vector<64x128xf32>
    %77 = tpu.matmul %74, %76, %cst_73 {dimension_numbers = #tpu.dot_dimension_numbers<[1], [0], [0], [1], [0, 0, 1, 1], [], []>} : vector<64x128xbf16>, vector<128x128xbf16>, vector<64x128xf32> -> vector<64x128xf32>
    %78 = arith.addf %71, %77 : vector<64x128xf32>
    %c1_74 = arith.constant 1 : index
    %c8_75 = arith.constant 8 : index
    %c0_76 = arith.constant 0 : index
    %79 = vector.load %arg9[%c1_74, %c8_75, %c0_76] : memref<10x17x128xf32, #tpu.memory_space<vmem>>, vector<8x8x128xf32>
    %80 = vector.shape_cast %79 : vector<8x8x128xf32> to vector<64x128xf32>
    %81 = arith.truncf %80 : vector<64x128xf32> to vector<64x128xbf16>
    %c1_77 = arith.constant 1 : index
    %c1_78 = arith.constant 1 : index
    %c0_79 = arith.constant 0 : index
    %c0_80 = arith.constant 0 : index
    %82 = vector.load %arg4[%c1_77, %c1_78, %c0_79, %c0_80] : memref<3x3x128x128xbf16, #tpu.memory_space<vmem>>, vector<1x1x128x128xbf16>
    %83 = vector.shape_cast %82 : vector<1x1x128x128xbf16> to vector<128x128xbf16>
    %cst_81 = arith.constant dense<0.000000e+00> : vector<64x128xf32>
    %84 = tpu.matmul %81, %83, %cst_81 {dimension_numbers = #tpu.dot_dimension_numbers<[1], [0], [0], [1], [0, 0, 1, 1], [], []>} : vector<64x128xbf16>, vector<128x128xbf16>, vector<64x128xf32> -> vector<64x128xf32>
    %85 = arith.addf %78, %84 : vector<64x128xf32>
    %c1_82 = arith.constant 1 : index
    %c9_83 = arith.constant 9 : index
    %c0_84 = arith.constant 0 : index
    %86 = vector.load %arg9[%c1_82, %c9_83, %c0_84] : memref<10x17x128xf32, #tpu.memory_space<vmem>>, vector<8x8x128xf32>
    %87 = vector.shape_cast %86 : vector<8x8x128xf32> to vector<64x128xf32>
    %88 = arith.truncf %87 : vector<64x128xf32> to vector<64x128xbf16>
    %c1_85 = arith.constant 1 : index
    %c2_86 = arith.constant 2 : index
    %c0_87 = arith.constant 0 : index
    %c0_88 = arith.constant 0 : index
    %89 = vector.load %arg4[%c1_85, %c2_86, %c0_87, %c0_88] : memref<3x3x128x128xbf16, #tpu.memory_space<vmem>>, vector<1x1x128x128xbf16>
    %90 = vector.shape_cast %89 : vector<1x1x128x128xbf16> to vector<128x128xbf16>
    %cst_89 = arith.constant dense<0.000000e+00> : vector<64x128xf32>
    %91 = tpu.matmul %88, %90, %cst_89 {dimension_numbers = #tpu.dot_dimension_numbers<[1], [0], [0], [1], [0, 0, 1, 1], [], []>} : vector<64x128xbf16>, vector<128x128xbf16>, vector<64x128xf32> -> vector<64x128xf32>
    %92 = arith.addf %85, %91 : vector<64x128xf32>
    %c2_90 = arith.constant 2 : index
    %c7_91 = arith.constant 7 : index
    %c0_92 = arith.constant 0 : index
    %93 = vector.load %arg9[%c2_90, %c7_91, %c0_92] : memref<10x17x128xf32, #tpu.memory_space<vmem>>, vector<8x8x128xf32>
    %94 = vector.shape_cast %93 : vector<8x8x128xf32> to vector<64x128xf32>
    %95 = arith.truncf %94 : vector<64x128xf32> to vector<64x128xbf16>
    %c2_93 = arith.constant 2 : index
    %c0_94 = arith.constant 0 : index
    %c0_95 = arith.constant 0 : index
    %c0_96 = arith.constant 0 : index
    %96 = vector.load %arg4[%c2_93, %c0_94, %c0_95, %c0_96] : memref<3x3x128x128xbf16, #tpu.memory_space<vmem>>, vector<1x1x128x128xbf16>
    %97 = vector.shape_cast %96 : vector<1x1x128x128xbf16> to vector<128x128xbf16>
    %cst_97 = arith.constant dense<0.000000e+00> : vector<64x128xf32>
    %98 = tpu.matmul %95, %97, %cst_97 {dimension_numbers = #tpu.dot_dimension_numbers<[1], [0], [0], [1], [0, 0, 1, 1], [], []>} : vector<64x128xbf16>, vector<128x128xbf16>, vector<64x128xf32> -> vector<64x128xf32>
    %99 = arith.addf %92, %98 : vector<64x128xf32>
    %c2_98 = arith.constant 2 : index
    %c8_99 = arith.constant 8 : index
    %c0_100 = arith.constant 0 : index
    %100 = vector.load %arg9[%c2_98, %c8_99, %c0_100] : memref<10x17x128xf32, #tpu.memory_space<vmem>>, vector<8x8x128xf32>
    %101 = vector.shape_cast %100 : vector<8x8x128xf32> to vector<64x128xf32>
    %102 = arith.truncf %101 : vector<64x128xf32> to vector<64x128xbf16>
    %c2_101 = arith.constant 2 : index
    %c1_102 = arith.constant 1 : index
    %c0_103 = arith.constant 0 : index
    %c0_104 = arith.constant 0 : index
    %103 = vector.load %arg4[%c2_101, %c1_102, %c0_103, %c0_104] : memref<3x3x128x128xbf16, #tpu.memory_space<vmem>>, vector<1x1x128x128xbf16>
    %104 = vector.shape_cast %103 : vector<1x1x128x128xbf16> to vector<128x128xbf16>
    %cst_105 = arith.constant dense<0.000000e+00> : vector<64x128xf32>
    %105 = tpu.matmul %102, %104, %cst_105 {dimension_numbers = #tpu.dot_dimension_numbers<[1], [0], [0], [1], [0, 0, 1, 1], [], []>} : vector<64x128xbf16>, vector<128x128xbf16>, vector<64x128xf32> -> vector<64x128xf32>
    %106 = arith.addf %99, %105 : vector<64x128xf32>
    %c2_106 = arith.constant 2 : index
    %c9_107 = arith.constant 9 : index
    %c0_108 = arith.constant 0 : index
    %107 = vector.load %arg9[%c2_106, %c9_107, %c0_108] : memref<10x17x128xf32, #tpu.memory_space<vmem>>, vector<8x8x128xf32>
    %108 = vector.shape_cast %107 : vector<8x8x128xf32> to vector<64x128xf32>
    %109 = arith.truncf %108 : vector<64x128xf32> to vector<64x128xbf16>
    %c2_109 = arith.constant 2 : index
    %c2_110 = arith.constant 2 : index
    %c0_111 = arith.constant 0 : index
    %c0_112 = arith.constant 0 : index
    %110 = vector.load %arg4[%c2_109, %c2_110, %c0_111, %c0_112] : memref<3x3x128x128xbf16, #tpu.memory_space<vmem>>, vector<1x1x128x128xbf16>
    %111 = vector.shape_cast %110 : vector<1x1x128x128xbf16> to vector<128x128xbf16>
    %cst_113 = arith.constant dense<0.000000e+00> : vector<64x128xf32>
    %112 = tpu.matmul %109, %111, %cst_113 {dimension_numbers = #tpu.dot_dimension_numbers<[1], [0], [0], [1], [0, 0, 1, 1], [], []>} : vector<64x128xbf16>, vector<128x128xbf16>, vector<64x128xf32> -> vector<64x128xf32>
    %113 = arith.addf %106, %112 : vector<64x128xf32>
    %c0_114 = arith.constant 0 : index
    %c0_115 = arith.constant 0 : index
    %114 = vector.load %arg5[%c0_114, %c0_115] : memref<1x128xf32, #tpu.memory_space<vmem>>, vector<1x128xf32>
    %115 = vector.broadcast %114 : vector<1x128xf32> to vector<64x128xf32>
    %116 = arith.addf %113, %115 : vector<64x128xf32>
    %cst_116 = arith.constant 0.000000e+00 : f32
    %117 = vector.broadcast %cst_116 : f32 to vector<64x128xf32>
    %118 = arith.cmpf ogt, %116, %117 : vector<64x128xf32>
    %c0_117 = arith.constant 0 : index
    %119 = memref.load %arg7[%c0_117] : memref<1xf32, #tpu.memory_space<smem>>
    %120 = vector.broadcast %119 : f32 to vector<64x128xf32>
    %121 = arith.mulf %120, %116 : vector<64x128xf32>
    %122 = arith.select %118, %116, %121 : vector<64x128xi1>, vector<64x128xf32>
    %123 = vector.shape_cast %122 : vector<64x128xf32> to vector<8x8x128xf32>
    %c0_118 = arith.constant 0 : index
    %c0_119 = arith.constant 0 : index
    %c0_120 = arith.constant 0 : index
    %c0_121 = arith.constant 0 : index
    %124 = vector.load %arg8[%c0_118, %c0_119, %c0_120, %c0_121] : memref<1x8x8x128xf32, #tpu.memory_space<vmem>>, vector<1x8x8x128xf32>
    %125 = vector.shape_cast %124 : vector<1x8x8x128xf32> to vector<8x8x128xf32>
    %126 = vector.shape_cast %123 : vector<8x8x128xf32> to vector<1x8x8x128xf32>
    tpu.vector_store %arg8[%c0_118, %c0_119, %c0_120, %c0_121], %126 {strides = array<i32>} : memref<1x8x8x128xf32, #tpu.memory_space<vmem>>, vector<1x8x8x128xf32>,
    return
  }
  func.func @transform_0(%arg0: i32) -> (i32, i32, i32, i32) {
    %c0_i32 = arith.constant 0 : i32
    %c0_i32_0 = arith.constant 0 : i32
    %c0_i32_1 = arith.constant 0 : i32
    %c0_i32_2 = arith.constant 0 : i32
    return %arg0, %c0_i32, %c0_i32_0, %c0_i32_1 : i32, i32, i32, i32
  }
  func.func @transform_1(%arg0: i32) -> (i32, i32, i32, i32) {
    %c0_i32 = arith.constant 0 : i32
    %c0_i32_0 = arith.constant 0 : i32
    %c0_i32_1 = arith.constant 0 : i32
    %c0_i32_2 = arith.constant 0 : i32
    %c0_i32_3 = arith.constant 0 : i32
    return %c0_i32, %c0_i32_0, %c0_i32_1, %c0_i32_2 : i32, i32, i32, i32
  }
  func.func @transform_2(%arg0: i32) -> (i32, i32) {
    %c0_i32 = arith.constant 0 : i32
    %c0_i32_0 = arith.constant 0 : i32
    %c0_i32_1 = arith.constant 0 : i32
    return %c0_i32, %c0_i32_0 : i32, i32
  }
  func.func @transform_3(%arg0: i32) -> (i32, i32, i32, i32) {
    %c0_i32 = arith.constant 0 : i32
    %c0_i32_0 = arith.constant 0 : i32
    %c0_i32_1 = arith.constant 0 : i32
    %c0_i32_2 = arith.constant 0 : i32
    %c0_i32_3 = arith.constant 0 : i32
    return %c0_i32, %c0_i32_0, %c0_i32_1, %c0_i32_2 : i32, i32, i32, i32
  }
  func.func @transform_4(%arg0: i32) -> (i32, i32) {
    %c0_i32 = arith.constant 0 : i32
    %c0_i32_0 = arith.constant 0 : i32
    %c0_i32_1 = arith.constant 0 : i32
    return %c0_i32, %c0_i32_0 : i32, i32
  }
  func.func @transform_5(%arg0: i32) -> i32 {
    %c0_i32 = arith.constant 0 : i32
    %c0_i32_0 = arith.constant 0 : i32
    return %c0_i32 : i32
  }
  func.func @transform_6(%arg0: i32) -> i32 {
    %c0_i32 = arith.constant 0 : i32
    %c0_i32_0 = arith.constant 0 : i32
    return %c0_i32 : i32
  }
  func.func @transform_7(%arg0: i32) -> (i32, i32, i32, i32) {
    %c0_i32 = arith.constant 0 : i32
    %c0_i32_0 = arith.constant 0 : i32
    %c0_i32_1 = arith.constant 0 : i32
    %c0_i32_2 = arith.constant 0 : i32
    return %arg0, %c0_i32, %c0_i32_0, %c0_i32_1 : i32, i32, i32, i32
  }
}

</mosaic_0001>

<llo_original>
// kernel: conv2d_down.1
$region0: #{conv2d_down.1}
  #allocation0 [shape = 'u32[]', space=smem, size = 0x4, offset = 0x4, fixed_abs, tag = 'smem constant byte address 0x4 - core index']
  #allocation1 [shape = 'u32[72,128]{1,0:T(1,128)}', space=vmem, size = 0x9000, scoped, tag = 'internal scratch']
  #allocation2 [shape = 'f32[10,17,128]{2,1,0:T(8,128)}', space=vmem, size = 0x1e000, scoped, tag = 'scratch operand']
  #allocation3 [shape = 'f32[1]{0:T(128)S(6)}', space=smem, size = 0x200, scoped, tag = 'scoped memory for conv2d_down.1']
  #allocation4 [shape = 'f32[1]{0:T(128)S(6)}', space=smem, size = 0x200, scoped, tag = 'scoped memory for conv2d_down.1']
  %s0 = inlined_call_operand.vmem [shape: bf16[2,9,9,16], index: 0, kind: input, shape index: {}]
  %s1 = inlined_call_operand.vmem [shape: bf16[2,2,16,128], index: 1, kind: input, shape index: {}]
  %s2 = inlined_call_operand.vmem [shape: f32[1,128], index: 2, kind: input, shape index: {}]
  %s3 = inlined_call_operand.vmem [shape: bf16[3,3,128,128], index: 3, kind: input, shape index: {}]
  %s4 = inlined_call_operand.vmem [shape: f32[1,128], index: 4, kind: input, shape index: {}]
  %s5 = inlined_call_operand.<no memory space> [shape: f32[1], index: 5, kind: input, shape index: {}]
  %s6 = inlined_call_operand.<no memory space> [shape: f32[1], index: 6, kind: input, shape index: {}]
  %s7 = inlined_call_operand.vmem [shape: f32[2,8,8,128], index: 7, kind: output, shape index: {}]
  %s8 = sld [smem:[#allocation0]]
  $region61: #{conv2d_down.1} parent=0
    _
  %s10 = ssub.s32 1, %s8
  %s11 = scalar_select 0, %s10, %s8
  %12 = sst [smem:[#allocation3]] %s5
  %13 = sst [smem:[#allocation4]] %s6
  loop: start=0, step=1, limit=4
  $region2: #{conv2d_down.1} parent=0 // loop_pre_header
    _
  $region3: #{conv2d_down.1} parent=0 // loop_header
    %s15 = sphi 0, %s19
    %p16 = scmp.ge.s32.totalorder %s15, 4
    %s25 = sphi 0, %s27
    %s28 = sphi 0, %s25
    %s29 = sphi 0, %s28
    %s45 = sphi 0, %s29
    %s49 = sphi 0, %s49
    %s51 = sphi 0, %s49
    %s52 = sphi 0, %s51
    %s66 = sphi 0, %s52
    %s70 = sphi 0, %s70
    %s72 = sphi 0, %s70
    %s73 = sphi 0, %s72
    %s87 = sphi 0, %s73
    %s91 = sphi 0, %s91
    %s93 = sphi 0, %s91
    %s94 = sphi 0, %s93
    %s108 = sphi 0, %s94
    %s112 = sphi 0, %s112
    %s114 = sphi 0, %s112
    %s115 = sphi 0, %s114
    %s129 = sphi 0, %s115
    %s133 = sphi 0, %s133
    %s135 = sphi 0, %s133
    %s136 = sphi 0, %s135
    %s150 = sphi 0, %s136
    %s154 = sphi 0, %s154
    %s156 = sphi 0, %s154
    %s157 = sphi 0, %s156
    %s171 = sphi 0, %s157
    %s177 = sphi 0, %s179
    %s180 = sphi 0, %s177
    %s181 = sphi 0, %s180
    %s197 = sphi 0, %s181
  $region4: #{conv2d_down.1} parent=0 // loop_header_branch
    %18 = sbr.rel (%p16) target = $region8
  $region5: #{conv2d_down.1} parent=0 // loop_body
    %s20 = ssub.s32 %s15, 1
    %s21 = ssub.s32 %s15, 2
    %s22 = sadd.s32 %s15, 1
    %s23 = ssub.s32 %s15, %s22
    %p24 = scmp.eq.s32.totalorder %s23, 0
    %s26 = sadd.s32 %s25, 1
    %s27 = scalar_select %p24, %s25, %s26
    %p30 = pneg %p24
    %p31 = scmp.eq.s32.totalorder %s15, 1
    %p32 = por %p30, %p31
    %p33 = scmp.ne.s32.totalorder %s25, %s28
    %p34 = scmp.eq.s32.totalorder %s15, 0
    %p35 = por %p33, %p34
    %p36 = scmp.ne.s32.totalorder %s25, %s28
    %p37 = scmp.eq.s32.totalorder %s20, 1
    %p38 = por %p36, %p37
    %p39 = scmp.ne.s32.totalorder %s28, %s29
    %p40 = scmp.eq.s32.totalorder %s20, 0
    %p41 = por %p39, %p40
    %p42 = scmp.ne.s32.totalorder %s28, %s29
    %p43 = scmp.eq.s32.totalorder %s21, 1
    %p44 = por %p42, %p43
    %p46 = scmp.ne.s32.totalorder %s29, %s45
    %p47 = scmp.eq.s32.totalorder %s21, 0
    %p48 = por %p46, %p47
    %s50 = sadd.s32 %s49, 1
    %p53 = scmp.eq.s32.totalorder %s15, 1
    %p54 = scmp.ne.s32.totalorder %s49, %s51
    %p55 = scmp.eq.s32.totalorder %s15, 0
    %p56 = por %p54, %p55
    %p57 = scmp.ne.s32.totalorder %s49, %s51
    %p58 = scmp.eq.s32.totalorder %s20, 1
    %p59 = por %p57, %p58
    %p60 = scmp.ne.s32.totalorder %s51, %s52
    %p61 = scmp.eq.s32.totalorder %s20, 0
    %p62 = por %p60, %p61
    %p63 = scmp.ne.s32.totalorder %s51, %s52
    %p64 = scmp.eq.s32.totalorder %s21, 1
    %p65 = por %p63, %p64
    %p67 = scmp.ne.s32.totalorder %s52, %s66
    %p68 = scmp.eq.s32.totalorder %s21, 0
    %p69 = por %p67, %p68
    %s71 = sadd.s32 %s70, 1
    %p74 = scmp.eq.s32.totalorder %s15, 1
    %p75 = scmp.ne.s32.totalorder %s70, %s72
    %p76 = scmp.eq.s32.totalorder %s15, 0
    %p77 = por %p75, %p76
    %p78 = scmp.ne.s32.totalorder %s70, %s72
    %p79 = scmp.eq.s32.totalorder %s20, 1
    %p80 = por %p78, %p79
    %p81 = scmp.ne.s32.totalorder %s72, %s73
    %p82 = scmp.eq.s32.totalorder %s20, 0
    %p83 = por %p81, %p82
    %p84 = scmp.ne.s32.totalorder %s72, %s73
    %p85 = scmp.eq.s32.totalorder %s21, 1
    %p86 = por %p84, %p85
    %p88 = scmp.ne.s32.totalorder %s73, %s87
    %p89 = scmp.eq.s32.totalorder %s21, 0
    %p90 = por %p88, %p89
    %s92 = sadd.s32 %s91, 1
    %p95 = scmp.eq.s32.totalorder %s15, 1
    %p96 = scmp.ne.s32.totalorder %s91, %s93
    %p97 = scmp.eq.s32.totalorder %s15, 0
    %p98 = por %p96, %p97
    %p99 = scmp.ne.s32.totalorder %s91, %s93
    %p100 = scmp.eq.s32.totalorder %s20, 1
    %p101 = por %p99, %p100
    %p102 = scmp.ne.s32.totalorder %s93, %s94
    %p103 = scmp.eq.s32.totalorder %s20, 0
    %p104 = por %p102, %p103
    %p105 = scmp.ne.s32.totalorder %s93, %s94
    %p106 = scmp.eq.s32.totalorder %s21, 1
    %p107 = por %p105, %p106
    %p109 = scmp.ne.s32.totalorder %s94, %s108
    %p110 = scmp.eq.s32.totalorder %s21, 0
    %p111 = por %p109, %p110
    %s113 = sadd.s32 %s112, 1
    %p116 = scmp.eq.s32.totalorder %s15, 1
    %p117 = scmp.ne.s32.totalorder %s112, %s114
    %p118 = scmp.eq.s32.totalorder %s15, 0
    %p119 = por %p117, %p118
    %p120 = scmp.ne.s32.totalorder %s112, %s114
    %p121 = scmp.eq.s32.totalorder %s20, 1
    %p122 = por %p120, %p121
    %p123 = scmp.ne.s32.totalorder %s114, %s115
    %p124 = scmp.eq.s32.totalorder %s20, 0
    %p125 = por %p123, %p124
    %p126 = scmp.ne.s32.totalorder %s114, %s115
    %p127 = scmp.eq.s32.totalorder %s21, 1
    %p128 = por %p126, %p127
    %p130 = scmp.ne.s32.totalorder %s115, %s129
    %p131 = scmp.eq.s32.totalorder %s21, 0
    %p132 = por %p130, %p131
    %s134 = sadd.s32 %s133, 1
    %p137 = scmp.eq.s32.totalorder %s15, 1
    %p138 = scmp.ne.s32.totalorder %s133, %s135
    %p139 = scmp.eq.s32.totalorder %s15, 0
    %p140 = por %p138, %p139
    %p141 = scmp.ne.s32.totalorder %s133, %s135
    %p142 = scmp.eq.s32.totalorder %s20, 1
    %p143 = por %p141, %p142
    %p144 = scmp.ne.s32.totalorder %s135, %s136
    %p145 = scmp.eq.s32.totalorder %s20, 0
    %p146 = por %p144, %p145
    %p147 = scmp.ne.s32.totalorder %s135, %s136
    %p148 = scmp.eq.s32.totalorder %s21, 1
    %p149 = por %p147, %p148
    %p151 = scmp.ne.s32.totalorder %s136, %s150
    %p152 = scmp.eq.s32.totalorder %s21, 0
    %p153 = por %p151, %p152
    %s155 = sadd.s32 %s154, 1
    %p158 = scmp.eq.s32.totalorder %s15, 1
    %p159 = scmp.ne.s32.totalorder %s154, %s156
    %p160 = scmp.eq.s32.totalorder %s15, 0
    %p161 = por %p159, %p160
    %p162 = scmp.ne.s32.totalorder %s154, %s156
    %p163 = scmp.eq.s32.totalorder %s20, 1
    %p164 = por %p162, %p163
    %p165 = scmp.ne.s32.totalorder %s156, %s157
    %p166 = scmp.eq.s32.totalorder %s20, 0
    %p167 = por %p165, %p166
    %p168 = scmp.ne.s32.totalorder %s156, %s157
    %p169 = scmp.eq.s32.totalorder %s21, 1
    %p170 = por %p168, %p169
    %p172 = scmp.ne.s32.totalorder %s157, %s171
    %p173 = scmp.eq.s32.totalorder %s21, 0
    %p174 = por %p172, %p173
    %s175 = ssub.s32 %s15, %s22
    %p176 = scmp.eq.s32.totalorder %s175, 0
    %s178 = sadd.s32 %s177, 1
    %s179 = scalar_select %p176, %s177, %s178
    %p182 = pneg %p176
    %p183 = scmp.eq.s32.totalorder %s15, 1
    %p184 = por %p182, %p183
    %p185 = scmp.ne.s32.totalorder %s177, %s180
    %p186 = scmp.eq.s32.totalorder %s15, 0
    %p187 = por %p185, %p186
    %p188 = scmp.ne.s32.totalorder %s177, %s180
    %p189 = scmp.eq.s32.totalorder %s20, 1
    %p190 = por %p188, %p189
    %p191 = scmp.ne.s32.totalorder %s180, %s181
    %p192 = scmp.eq.s32.totalorder %s20, 0
    %p193 = por %p191, %p192
    %p194 = scmp.ne.s32.totalorder %s180, %s181
    %p195 = scmp.eq.s32.totalorder %s21, 1
    %p196 = por %p194, %p195
    %p198 = scmp.ne.s32.totalorder %s181, %s197
    %p199 = scmp.eq.s32.totalorder %s21, 0
    %p200 = por %p198, %p199
    %p201 = scmp.le.s32.totalorder 1, %s15
    %p202 = scmp.lt.s32.totalorder %s15, 3
    %p203 = pnand %p201, %p202
    %p204 = pneg %p203
    // Predicated region
    $region9: #{conv2d_down.1} parent=5 // pred_check
      _
    $region10: #{conv2d_down.1} parent=5 // pred_check_branch
      %206 = sbr.rel (%p203) target = $region12
    $region11: #{conv2d_down.1} parent=5 // pred_region
      %s207 = ssub.s32 %s15, 1
      // Predicated region
      $region13: #{conv2d_down.1} parent=11 // pred_check
        %p208 = pneg %p62
      $region14: #{conv2d_down.1} parent=11 // pred_check_branch
        %210 = sbr.rel (%p208) target = $region16
      $region15: #{conv2d_down.1} parent=11 // pred_region
        _
      $region16: #{conv2d_down.1} parent=11 // pred_fallthru
        _
      // Predicated region
      $region17: #{conv2d_down.1} parent=11 // pred_check
        %p211 = pneg %p83
      $region18: #{conv2d_down.1} parent=11 // pred_check_branch
        %213 = sbr.rel (%p211) target = $region20
      $region19: #{conv2d_down.1} parent=11 // pred_region
        _
      $region20: #{conv2d_down.1} parent=11 // pred_fallthru
        _
      // Predicated region
      $region21: #{conv2d_down.1} parent=11 // pred_check
        %p214 = pneg %p104
      $region22: #{conv2d_down.1} parent=11 // pred_check_branch
        %216 = sbr.rel (%p214) target = $region24
      $region23: #{conv2d_down.1} parent=11 // pred_region
        _
      $region24: #{conv2d_down.1} parent=11 // pred_fallthru
        _
      // Predicated region
      $region25: #{conv2d_down.1} parent=11 // pred_check
        %p217 = pneg %p125
      $region26: #{conv2d_down.1} parent=11 // pred_check_branch
        %219 = sbr.rel (%p217) target = $region28
      $region27: #{conv2d_down.1} parent=11 // pred_region
        _
      $region28: #{conv2d_down.1} parent=11 // pred_fallthru
        _
      // Predicated region
      $region29: #{conv2d_down.1} parent=11 // pred_check
        %p220 = pneg %p146
      $region30: #{conv2d_down.1} parent=11 // pred_check_branch
        %222 = sbr.rel (%p220) target = $region32
      $region31: #{conv2d_down.1} parent=11 // pred_region
        _
      $region32: #{conv2d_down.1} parent=11 // pred_fallthru
        _
      // Predicated region
      $region33: #{conv2d_down.1} parent=11 // pred_check
        %p223 = pneg %p167
      $region34: #{conv2d_down.1} parent=11 // pred_check_branch
        %225 = sbr.rel (%p223) target = $region36
      $region35: #{conv2d_down.1} parent=11 // pred_region
        _
      $region36: #{conv2d_down.1} parent=11 // pred_fallthru
        _
    $region12: #{conv2d_down.1} parent=5 // pred_fallthru
      _
    %p226 = scmp.lt.s32.totalorder %s15, 2
    // Predicated region
    $region37: #{conv2d_down.1} parent=5 // pred_check
      %p227 = pneg %p226
    $region38: #{conv2d_down.1} parent=5 // pred_check_branch
      %229 = sbr.rel (%p227) target = $region40
    $region39: #{conv2d_down.1} parent=5 // pred_region
      // Predicated region
      $region41: #{conv2d_down.1} parent=39 // pred_check
        %p230 = pneg %p35
      $region42: #{conv2d_down.1} parent=39 // pred_check_branch
        %232 = sbr.rel (%p230) target = $region44
      $region43: #{conv2d_down.1} parent=39 // pred_region
        %p233 = scmp.lt.s32.totalorder %s15, 1
        %s234 = scalar_select %p233, %s15, 1
        %s235 = smul.addr %s234, 18
        %s236 = smul.addr %s235, 4
        %s237 = scalar_lea.vmem %s0, %s236
      $region44: #{conv2d_down.1} parent=39 // pred_fallthru
        _
    $region40: #{conv2d_down.1} parent=5 // pred_fallthru
      _
    %p238 = scmp.le.s32.totalorder 1, %s15
    %p239 = scmp.lt.s32.totalorder %s15, 3
    %p240 = pnand %p238, %p239
    %p241 = pneg %p240
    // Predicated region
    $region45: #{conv2d_down.1} parent=5 // pred_check
      _
    $region46: #{conv2d_down.1} parent=5 // pred_check_branch
      %243 = sbr.rel (%p240) target = $region48
    $region47: #{conv2d_down.1} parent=5 // pred_region
      %s244 = ssub.s32 %s15, 1
      %p245 = scmp.lt.s32.totalorder %s20, 1
      %s246 = scalar_select %p245, %s20, 1
      %s247 = smul.addr %s246, 18
      %s248 = smul.addr %s247, 4
      %s249 = scalar_lea.vmem %s0, %s248
      %p250 = pneg %p41
      %p251 = pneg %p38
      %p252 = pneg %p62
      %p253 = pneg %p59
      %p254 = pneg %p83
      %p255 = pneg %p80
      %p256 = pneg %p104
      %p257 = pneg %p101
      %p258 = pneg %p125
      %p259 = pneg %p122
      %p260 = pneg %p146
      %p261 = pneg %p143
      %p262 = pneg %p167
      %p263 = pneg %p164
      %p264 = pneg %p193
      %p265 = pneg %p190
      %p266 = scmp.lt.s32.totalorder %s20, 1
      %s267 = scalar_select %p266, %s20, 1
      %s268 = smul.addr %s267, 8
      %s269 = smul.addr %s268, 8
      %s270 = scalar_lea.vmem %s7, %s269
      %p271 = scmp.lt.s32.totalorder %s20, 1
      %s272 = scalar_select %p271, %s20, 1
      %s273 = smul.addr %s272, 18
      %s274 = smul.addr %s273, 4
      %s275 = scalar_lea.vmem %s0, %s274
      %p276 = scmp.lt.s32.totalorder %s20, 1
      %s277 = scalar_select %p276, %s20, 1
      %s278 = smul.addr %s277, 8
      %s279 = smul.addr %s278, 8
      %s280 = scalar_lea.vmem %s7, %s279
      %v282 = vld [vmem:[%s275] sm:$0xf]
      %v283 = vld [vmem:[%s275 + $0x8] sm:$0xf]
      %v284 = vld [vmem:[%s275 + $0x10] sm:$0xf]
      %v285 = vld [vmem:[%s275 + $0x18] sm:$0xf]
      %v286 = vld [vmem:[%s275 + $0x20] sm:$0xf]
      %v287 = vld [vmem:[%s275 + $0x28] sm:$0xf]
      %v288 = vld [vmem:[%s275 + $0x30] sm:$0xf]
      %v289 = vld [vmem:[%s275 + $0x38] sm:$0xf]
      %v290 = vunpack.c.l.bf16 %v282
      %v291 = vunpack.c.l.bf16 %v283
      %v292 = vunpack.c.l.bf16 %v284
      %v293 = vunpack.c.l.bf16 %v285
      %v294 = vunpack.c.l.bf16 %v286
      %v295 = vunpack.c.l.bf16 %v287
      %v296 = vunpack.c.l.bf16 %v288
      %v297 = vunpack.c.l.bf16 %v289
      %v298 = vpack.c.bf16 %v291, %v290
      %v299 = vpack.c.bf16 %v293, %v292
      %v300 = vpack.c.bf16 %v295, %v294
      %v301 = vpack.c.bf16 %v297, %v296
      %v302 = vld [vmem:[%s1] sm:$0xf]
      %v303 = vld [vmem:[%s1 + $0x4] sm:$0xf]
      %v304 = vld [vmem:[%s275 + $0x4] sm:$0x1]
      %v305 = vld [vmem:[%s275 + $0xc] sm:$0x1]
      %v306 = vld [vmem:[%s275 + $0x14] sm:$0x1]
      %v307 = vld [vmem:[%s275 + $0x1c] sm:$0x1]
      %v308 = vld [vmem:[%s275 + $0x24] sm:$0x1]
      %v309 = vld [vmem:[%s275 + $0x2c] sm:$0x1]
      %v310 = vld [vmem:[%s275 + $0x34] sm:$0x1]
      %v311 = vld [vmem:[%s275 + $0x3c] sm:$0x1]
      %v312 = vunpack.c.l.bf16 %v304
      %v313 = vunpack.c.l.bf16 %v305
      %v314 = vunpack.c.l.bf16 %v306
      %v315 = vunpack.c.l.bf16 %v307
      %v316 = vunpack.c.l.bf16 %v308
      %v317 = vunpack.c.l.bf16 %v309
      %v318 = vunpack.c.l.bf16 %v310
      %v319 = vunpack.c.l.bf16 %v311
      %vm336 = vcmask 1046528
      %v337 = vrot.slane %v290, 1
      %v338 = vrot.slane %v312, 1
      %v339 = vsel %vm336, %v337, %v338
      %v340 = vrot.slane %v291, 1
      %v341 = vrot.slane %v313, 1
      %v342 = vsel %vm336, %v340, %v341
      %v343 = vrot.slane %v292, 1
      %v344 = vrot.slane %v314, 1
      %v345 = vsel %vm336, %v343, %v344
      %v346 = vrot.slane %v293, 1
      %v347 = vrot.slane %v315, 1
      %v348 = vsel %vm336, %v346, %v347
      %v349 = vrot.slane %v294, 1
      %v350 = vrot.slane %v316, 1
      %v351 = vsel %vm336, %v349, %v350
      %v352 = vrot.slane %v295, 1
      %v353 = vrot.slane %v317, 1
      %v354 = vsel %vm336, %v352, %v353
      %v355 = vrot.slane %v296, 1
      %v356 = vrot.slane %v318, 1
      %v357 = vsel %vm336, %v355, %v356
      %v358 = vrot.slane %v297, 1
      %v359 = vrot.slane %v319, 1
      %v360 = vsel %vm336, %v358, %v359
      %v369 = vpack.c.bf16 %v342, %v339
      %v370 = vpack.c.bf16 %v348, %v345
      %v371 = vpack.c.bf16 %v354, %v351
      %v372 = vpack.c.bf16 %v360, %v357
      %s373 = scalar_lea.vmem %s1, 8
      %v374 = vld [vmem:[%s373] sm:$0xf]
      %v375 = vld [vmem:[%s373 + $0x4] sm:$0xf]
      %v378 = vunpack.c.l.b16 %v374
      %v379 = vunpack.c.l.b16 %v375
      %v380 = vpack.c.b16 %v379, %v378
      %vm382 = vcmask 130048
      %v384 = vsel %vm382, %v369, 0
      %v387 = vsel %vm382, %v370, 0
      %v390 = vsel %vm382, %v371, 0
      %v393 = vsel %vm382, %v372, 0
      %395 = vmatpush.bf16.msra.mxu0 0
      %396 = vmatpush.bf16.msra.mxu0 0
      %397 = vmatpush.bf16.msra.mxu0 0
      %398 = vmatpush.bf16.msra.mxu0 0
      %399 = vmatpush.bf16.msra.mxu0 0
      %400 = vmatpush.bf16.msra.mxu0 0
      %401 = vmatpush.bf16.msra.mxu0 0
      %402 = vmatpush.bf16.msra.mxu0 %v380
      %403 = vmatmul.bf16.gmra.mxu0 %v384
      %v404 = vpop.f32.mrf.mxu0
      %v405 = vadd.f32 0.0, %v404
      %v406 = vpop.f32.mrf.mxu0
      %v407 = vadd.f32 0.0, %v406
      %408 = vmatmul.bf16.gmra.mxu0 %v387
      %v409 = vpop.f32.mrf.mxu0
      %v410 = vadd.f32 0.0, %v409
      %v411 = vpop.f32.mrf.mxu0
      %v412 = vadd.f32 0.0, %v411
      %413 = vmatmul.bf16.gmra.mxu0 %v390
      %v414 = vpop.f32.mrf.mxu0
      %v415 = vadd.f32 0.0, %v414
      %v416 = vpop.f32.mrf.mxu0
      %v417 = vadd.f32 0.0, %v416
      %418 = vmatmul.bf16.gmra.mxu0 %v393
      %v419 = vpop.f32.mrf.mxu0
      %v420 = vadd.f32 0.0, %v419
      %v421 = vpop.f32.mrf.mxu0
      %v422 = vadd.f32 0.0, %v421
      %423 = vdwg.mxu0
      %v426 = vunpack.c.l.b16 %v302
      %v427 = vunpack.c.l.b16 %v303
      %v428 = vpack.c.b16 %v427, %v426
      %v431 = vsel %vm382, %v298, 0
      %v434 = vsel %vm382, %v299, 0
      %v437 = vsel %vm382, %v300, 0
      %v440 = vsel %vm382, %v301, 0
      %442 = vmatpush.bf16.msra.mxu0 0
      %443 = vmatpush.bf16.msra.mxu0 0
      %444 = vmatpush.bf16.msra.mxu0 0
      %445 = vmatpush.bf16.msra.mxu0 0
      %446 = vmatpush.bf16.msra.mxu0 0
      %447 = vmatpush.bf16.msra.mxu0 0
      %448 = vmatpush.bf16.msra.mxu0 0
      %449 = vmatpush.bf16.msra.mxu0 %v428
      %450 = vmatmul.bf16.gmra.mxu0 %v431
      %v451 = vpop.f32.mrf.mxu0
      %v452 = vadd.f32 %v405, %v451
      %v453 = vpop.f32.mrf.mxu0
      %v454 = vadd.f32 %v407, %v453
      %455 = vmatmul.bf16.gmra.mxu0 %v434
      %v456 = vpop.f32.mrf.mxu0
      %v457 = vadd.f32 %v410, %v456
      %v458 = vpop.f32.mrf.mxu0
      %v459 = vadd.f32 %v412, %v458
      %460 = vmatmul.bf16.gmra.mxu0 %v437
      %v461 = vpop.f32.mrf.mxu0
      %v462 = vadd.f32 %v415, %v461
      %v463 = vpop.f32.mrf.mxu0
      %v464 = vadd.f32 %v417, %v463
      %465 = vmatmul.bf16.gmra.mxu0 %v440
      %v466 = vpop.f32.mrf.mxu0
      %v467 = vadd.f32 %v420, %v466
      %v468 = vpop.f32.mrf.mxu0
      %v469 = vadd.f32 %v422, %v468
      %470 = vdwg.mxu0
      %s471 = scalar_lea.vmem %s275, 8
      %v472 = vld [vmem:[%s471] sm:$0xf]
      %v473 = vld [vmem:[%s471 + $0x8] sm:$0xf]
      %v474 = vld [vmem:[%s471 + $0x10] sm:$0xf]
      %v475 = vld [vmem:[%s471 + $0x18] sm:$0xf]
      %v476 = vld [vmem:[%s471 + $0x20] sm:$0xf]
      %v477 = vld [vmem:[%s471 + $0x28] sm:$0xf]
      %v478 = vld [vmem:[%s471 + $0x30] sm:$0xf]
      %v479 = vld [vmem:[%s471 + $0x38] sm:$0xf]
      %v480 = vunpack.c.l.bf16 %v472
      %v481 = vunpack.c.l.bf16 %v473
      %v482 = vunpack.c.l.bf16 %v474
      %v483 = vunpack.c.l.bf16 %v475
      %v484 = vunpack.c.l.bf16 %v476
      %v485 = vunpack.c.l.bf16 %v477
      %v486 = vunpack.c.l.bf16 %v478
      %v487 = vunpack.c.l.bf16 %v479
      %v488 = vpack.c.bf16 %v481, %v480
      %v489 = vpack.c.bf16 %v483, %v482
      %v490 = vpack.c.bf16 %v485, %v484
      %v491 = vpack.c.bf16 %v487, %v486
      %s492 = scalar_lea.vmem %s1, 16
      %v493 = vld [vmem:[%s492] sm:$0xf]
      %v494 = vld [vmem:[%s492 + $0x4] sm:$0xf]
      %v497 = vunpack.c.l.b16 %v493
      %v498 = vunpack.c.l.b16 %v494
      %v499 = vpack.c.b16 %v498, %v497
      %v502 = vsel %vm382, %v488, 0
      %v505 = vsel %vm382, %v489, 0
      %v508 = vsel %vm382, %v490, 0
      %v511 = vsel %vm382, %v491, 0
      %513 = vmatpush.bf16.msra.mxu0 0
      %514 = vmatpush.bf16.msra.mxu0 0
      %515 = vmatpush.bf16.msra.mxu0 0
      %516 = vmatpush.bf16.msra.mxu0 0
      %517 = vmatpush.bf16.msra.mxu0 0
      %518 = vmatpush.bf16.msra.mxu0 0
      %519 = vmatpush.bf16.msra.mxu0 0
      %520 = vmatpush.bf16.msra.mxu0 %v499
      %521 = vmatmul.bf16.gmra.mxu0 %v502
      %v522 = vpop.f32.mrf.mxu0
      %v523 = vadd.f32 0.0, %v522
      %v524 = vpop.f32.mrf.mxu0
      %v525 = vadd.f32 0.0, %v524
      %526 = vmatmul.bf16.gmra.mxu0 %v505
      %v527 = vpop.f32.mrf.mxu0
      %v528 = vadd.f32 0.0, %v527
      %v529 = vpop.f32.mrf.mxu0
      %v530 = vadd.f32 0.0, %v529
      %531 = vmatmul.bf16.gmra.mxu0 %v508
      %v532 = vpop.f32.mrf.mxu0
      %v533 = vadd.f32 0.0, %v532
      %v534 = vpop.f32.mrf.mxu0
      %v535 = vadd.f32 0.0, %v534
      %536 = vmatmul.bf16.gmra.mxu0 %v511
      %v537 = vpop.f32.mrf.mxu0
      %v538 = vadd.f32 0.0, %v537
      %v539 = vpop.f32.mrf.mxu0
      %v540 = vadd.f32 0.0, %v539
      %541 = vdwg.mxu0
      %v542 = vadd.f32 %v452, %v523
      %v543 = vadd.f32 %v454, %v525
      %v544 = vadd.f32 %v457, %v528
      %v545 = vadd.f32 %v459, %v530
      %v546 = vadd.f32 %v462, %v533
      %v547 = vadd.f32 %v464, %v535
      %v548 = vadd.f32 %v467, %v538
      %v549 = vadd.f32 %v469, %v540
      %v550 = vld [vmem:[%s471] sm:$0xf]
      %v551 = vld [vmem:[%s471 + $0x4] sm:$0x1]
      %v552 = vld [vmem:[%s471 + $0x8] sm:$0xf]
      %v553 = vld [vmem:[%s471 + $0xc] sm:$0x1]
      %v554 = vld [vmem:[%s471 + $0x10] sm:$0xf]
      %v555 = vld [vmem:[%s471 + $0x14] sm:$0x1]
      %v556 = vld [vmem:[%s471 + $0x18] sm:$0xf]
      %v557 = vld [vmem:[%s471 + $0x1c] sm:$0x1]
      %v558 = vld [vmem:[%s471 + $0x20] sm:$0xf]
      %v559 = vld [vmem:[%s471 + $0x24] sm:$0x1]
      %v560 = vld [vmem:[%s471 + $0x28] sm:$0xf]
      %v561 = vld [vmem:[%s471 + $0x2c] sm:$0x1]
      %v562 = vld [vmem:[%s471 + $0x30] sm:$0xf]
      %v563 = vld [vmem:[%s471 + $0x34] sm:$0x1]
      %v564 = vld [vmem:[%s471 + $0x38] sm:$0xf]
      %v565 = vld [vmem:[%s471 + $0x3c] sm:$0x1]
      %v566 = vunpack.c.l.bf16 %v550
      %v567 = vunpack.c.l.bf16 %v551
      %v568 = vunpack.c.l.bf16 %v552
      %v569 = vunpack.c.l.bf16 %v553
      %v570 = vunpack.c.l.bf16 %v554
      %v571 = vunpack.c.l.bf16 %v555
      %v572 = vunpack.c.l.bf16 %v556
      %v573 = vunpack.c.l.bf16 %v557
      %v574 = vunpack.c.l.bf16 %v558
      %v575 = vunpack.c.l.bf16 %v559
      %v576 = vunpack.c.l.bf16 %v560
      %v577 = vunpack.c.l.bf16 %v561
      %v578 = vunpack.c.l.bf16 %v562
      %v579 = vunpack.c.l.bf16 %v563
      %v580 = vunpack.c.l.bf16 %v564
      %v581 = vunpack.c.l.bf16 %v565
      %v598 = vrot.slane %v566, 1
      %v599 = vrot.slane %v567, 1
      %v600 = vsel %vm336, %v598, %v599
      %v601 = vrot.slane %v568, 1
      %v602 = vrot.slane %v569, 1
      %v603 = vsel %vm336, %v601, %v602
      %v604 = vrot.slane %v570, 1
      %v605 = vrot.slane %v571, 1
      %v606 = vsel %vm336, %v604, %v605
      %v607 = vrot.slane %v572, 1
      %v608 = vrot.slane %v573, 1
      %v609 = vsel %vm336, %v607, %v608
      %v610 = vrot.slane %v574, 1
      %v611 = vrot.slane %v575, 1
      %v612 = vsel %vm336, %v610, %v611
      %v613 = vrot.slane %v576, 1
      %v614 = vrot.slane %v577, 1
      %v615 = vsel %vm336, %v613, %v614
      %v616 = vrot.slane %v578, 1
      %v617 = vrot.slane %v579, 1
      %v618 = vsel %vm336, %v616, %v617
      %v619 = vrot.slane %v580, 1
      %v620 = vrot.slane %v581, 1
      %v621 = vsel %vm336, %v619, %v620
      %v630 = vpack.c.bf16 %v603, %v600
      %v631 = vpack.c.bf16 %v609, %v606
      %v632 = vpack.c.bf16 %v615, %v612
      %v633 = vpack.c.bf16 %v621, %v618
      %s634 = scalar_lea.vmem %s1, 24
      %v635 = vld [vmem:[%s634] sm:$0xf]
      %v636 = vld [vmem:[%s634 + $0x4] sm:$0xf]
      %v639 = vunpack.c.l.b16 %v635
      %v640 = vunpack.c.l.b16 %v636
      %v641 = vpack.c.b16 %v640, %v639
      %v644 = vsel %vm382, %v630, 0
      %v647 = vsel %vm382, %v631, 0
      %v650 = vsel %vm382, %v632, 0
      %v653 = vsel %vm382, %v633, 0
      %655 = vmatpush.bf16.msra.mxu0 0
      %656 = vmatpush.bf16.msra.mxu0 0
      %657 = vmatpush.bf16.msra.mxu0 0
      %658 = vmatpush.bf16.msra.mxu0 0
      %659 = vmatpush.bf16.msra.mxu0 0
      %660 = vmatpush.bf16.msra.mxu0 0
      %661 = vmatpush.bf16.msra.mxu0 0
      %662 = vmatpush.bf16.msra.mxu0 %v641
      %663 = vmatmul.bf16.gmra.mxu0 %v644
      %v664 = vpop.f32.mrf.mxu0
      %v665 = vadd.f32 0.0, %v664
      %v666 = vpop.f32.mrf.mxu0
      %v667 = vadd.f32 0.0, %v666
      %668 = vmatmul.bf16.gmra.mxu0 %v647
      %v669 = vpop.f32.mrf.mxu0
      %v670 = vadd.f32 0.0, %v669
      %v671 = vpop.f32.mrf.mxu0
      %v672 = vadd.f32 0.0, %v671
      %673 = vmatmul.bf16.gmra.mxu0 %v650
      %v674 = vpop.f32.mrf.mxu0
      %v675 = vadd.f32 0.0, %v674
      %v676 = vpop.f32.mrf.mxu0
      %v677 = vadd.f32 0.0, %v676
      %678 = vmatmul.bf16.gmra.mxu0 %v653
      %v679 = vpop.f32.mrf.mxu0
      %v680 = vadd.f32 0.0, %v679
      %v681 = vpop.f32.mrf.mxu0
      %v682 = vadd.f32 0.0, %v681
      %683 = vdwg.mxu0
      %v684 = vadd.f32 %v542, %v665
      %v685 = vadd.f32 %v543, %v667
      %v686 = vadd.f32 %v544, %v670
      %v687 = vadd.f32 %v545, %v672
      %v688 = vadd.f32 %v546, %v675
      %v689 = vadd.f32 %v547, %v677
      %v690 = vadd.f32 %v548, %v680
      %v691 = vadd.f32 %v549, %v682
      %v692 = vld [vmem:[%s2] sm:$0x1]
      %v694 = vperm.slane %v692, 0
      %v696 = vadd.f32 %v684, %v694
      %v697 = vadd.f32 %v685, %v694
      %v698 = vadd.f32 %v686, %v694
      %v699 = vadd.f32 %v687, %v694
      %v700 = vadd.f32 %v688, %v694
      %v701 = vadd.f32 %v689, %v694
      %v702 = vadd.f32 %v690, %v694
      %v703 = vadd.f32 %v691, %v694
      %vm704 = vcmp.gt.f32.partialorder %v696, 0.0
      %vm705 = vcmp.gt.f32.partialorder %v697, 0.0
      %vm706 = vcmp.gt.f32.partialorder %v698, 0.0
      %vm707 = vcmp.gt.f32.partialorder %v699, 0.0
      %vm708 = vcmp.gt.f32.partialorder %v700, 0.0
      %vm709 = vcmp.gt.f32.partialorder %v701, 0.0
      %vm710 = vcmp.gt.f32.partialorder %v702, 0.0
      %vm711 = vcmp.gt.f32.partialorder %v703, 0.0
      %s712 = sld [smem:[#allocation3]]
      %v713 = vstv %s712
      %v714 = vmul.f32 %v713, %v696
      %v715 = vmul.f32 %v713, %v697
      %v716 = vmul.f32 %v713, %v698
      %v717 = vmul.f32 %v713, %v699
      %v718 = vmul.f32 %v713, %v700
      %v719 = vmul.f32 %v713, %v701
      %v720 = vmul.f32 %v713, %v702
      %v721 = vmul.f32 %v713, %v703
      %v722 = vsel %vm704, %v696, %v714
      %v723 = vsel %vm705, %v697, %v715
      %v724 = vsel %vm706, %v698, %v716
      %v725 = vsel %vm707, %v699, %v717
      %v726 = vsel %vm708, %v700, %v718
      %v727 = vsel %vm709, %v701, %v719
      %v728 = vsel %vm710, %v702, %v720
      %v729 = vsel %vm711, %v703, %v721
      %730 = vst [vmem:[#allocation2] sm:$0xff] 0.0
      %731 = vst [vmem:[#allocation2 + $0x8] sm:$0xff] 0.0
      %732 = vst [vmem:[#allocation2 + $0x10] sm:$0x1] 0.0
      %733 = vst [vmem:[#allocation2 + $0x18] sm:$0xff] 0.0
      %734 = vst [vmem:[#allocation2 + $0x20] sm:$0xff] 0.0
      %735 = vst [vmem:[#allocation2 + $0x28] sm:$0x1] 0.0
      %736 = vst [vmem:[#allocation2 + $0x30] sm:$0xff] 0.0
      %737 = vst [vmem:[#allocation2 + $0x38] sm:$0xff] 0.0
      %738 = vst [vmem:[#allocation2 + $0x40] sm:$0x1] 0.0
      %739 = vst [vmem:[#allocation2 + $0x48] sm:$0xff] 0.0
      %740 = vst [vmem:[#allocation2 + $0x50] sm:$0xff] 0.0
      %741 = vst [vmem:[#allocation2 + $0x58] sm:$0x1] 0.0
      %742 = vst [vmem:[#allocation2 + $0x60] sm:$0xff] 0.0
      %743 = vst [vmem:[#allocation2 + $0x68] sm:$0xff] 0.0
      %744 = vst [vmem:[#allocation2 + $0x70] sm:$0x1] 0.0
      %745 = vst [vmem:[#allocation2 + $0x78] sm:$0xff] 0.0
      %746 = vst [vmem:[#allocation2 + $0x80] sm:$0xff] 0.0
      %747 = vst [vmem:[#allocation2 + $0x88] sm:$0x1] 0.0
      %748 = vst [vmem:[#allocation2 + $0x90] sm:$0xff] 0.0
      %749 = vst [vmem:[#allocation2 + $0x98] sm:$0xff] 0.0
      %750 = vst [vmem:[#allocation2 + $0xa0] sm:$0x1] 0.0
      %751 = vst [vmem:[#allocation2 + $0xa8] sm:$0xff] 0.0
      %752 = vst [vmem:[#allocation2 + $0xb0] sm:$0xff] 0.0
      %753 = vst [vmem:[#allocation2 + $0xb8] sm:$0x1] 0.0
      %754 = vst [vmem:[#allocation2 + $0xc0] sm:$0xff] 0.0
      %755 = vst [vmem:[#allocation2 + $0xc8] sm:$0xff] 0.0
      %756 = vst [vmem:[#allocation2 + $0xd0] sm:$0x1] 0.0
      %757 = vst [vmem:[#allocation2 + $0xd8] sm:$0xff] 0.0
      %758 = vst [vmem:[#allocation2 + $0xe0] sm:$0xff] 0.0
      %759 = vst [vmem:[#allocation2 + $0xe8] sm:$0x1] 0.0
      %s760 = scalar_lea.vmem [#allocation2], 24
      %761 = vst [vmem:[%s760 + $0x8] sm:$0xff] %v722
      %762 = vst [vmem:[%s760 + $0x20] sm:$0xff] %v723
      %763 = vst [vmem:[%s760 + $0x38] sm:$0xff] %v724
      %764 = vst [vmem:[%s760 + $0x50] sm:$0xff] %v725
      %765 = vst [vmem:[%s760 + $0x68] sm:$0xff] %v726
      %766 = vst [vmem:[%s760 + $0x80] sm:$0xff] %v727
      %767 = vst [vmem:[%s760 + $0x98] sm:$0xff] %v728
      %768 = vst [vmem:[%s760 + $0xb0] sm:$0xff] %v729
      %v769 = vld [vmem:[#allocation2 + $0x7] sm:$0xff]
      %v770 = vld [vmem:[#allocation2 + $0x1f] sm:$0xff]
      %v771 = vld [vmem:[#allocation2 + $0x37] sm:$0xff]
      %v772 = vld [vmem:[#allocation2 + $0x4f] sm:$0xff]
      %v773 = vld [vmem:[#allocation2 + $0x67] sm:$0xff]
      %v774 = vld [vmem:[#allocation2 + $0x7f] sm:$0xff]
      %v775 = vld [vmem:[#allocation2 + $0x97] sm:$0xff]
      %v776 = vld [vmem:[#allocation2 + $0xaf] sm:$0xff]
      %v777 = vpack.c.bf16 %v770, %v769
      %v778 = vpack.c.bf16 %v772, %v771
      %v779 = vpack.c.bf16 %v774, %v773
      %v780 = vpack.c.bf16 %v776, %v775
      %v781 = vld [vmem:[%s3] sm:$0xf]
      %v782 = vld [vmem:[%s3 + $0x4] sm:$0xf]
      %v783 = vld [vmem:[%s3 + $0x8] sm:$0xf]
      %v784 = vld [vmem:[%s3 + $0xc] sm:$0xf]
      %v785 = vld [vmem:[%s3 + $0x10] sm:$0xf]
      %v786 = vld [vmem:[%s3 + $0x14] sm:$0xf]
      %v787 = vld [vmem:[%s3 + $0x18] sm:$0xf]
      %v788 = vld [vmem:[%s3 + $0x1c] sm:$0xf]
      %v789 = vld [vmem:[%s3 + $0x20] sm:$0xf]
      %v790 = vld [vmem:[%s3 + $0x24] sm:$0xf]
      %v791 = vld [vmem:[%s3 + $0x28] sm:$0xf]
      %v792 = vld [vmem:[%s3 + $0x2c] sm:$0xf]
      %v793 = vld [vmem:[%s3 + $0x30] sm:$0xf]
      %v794 = vld [vmem:[%s3 + $0x34] sm:$0xf]
      %v795 = vld [vmem:[%s3 + $0x38] sm:$0xf]
      %v796 = vld [vmem:[%s3 + $0x3c] sm:$0xf]
      %v797 = vld [vmem:[#allocation2 + $0x8] sm:$0xff]
      %v798 = vld [vmem:[#allocation2 + $0x20] sm:$0xff]
      %v799 = vld [vmem:[#allocation2 + $0x38] sm:$0xff]
      %v800 = vld [vmem:[#allocation2 + $0x50] sm:$0xff]
      %v801 = vld [vmem:[#allocation2 + $0x68] sm:$0xff]
      %v802 = vld [vmem:[#allocation2 + $0x80] sm:$0xff]
      %v803 = vld [vmem:[#allocation2 + $0x98] sm:$0xff]
      %v804 = vld [vmem:[#allocation2 + $0xb0] sm:$0xff]
      %v805 = vpack.c.bf16 %v798, %v797
      %v806 = vpack.c.bf16 %v800, %v799
      %v807 = vpack.c.bf16 %v802, %v801
      %v808 = vpack.c.bf16 %v804, %v803
      %s809 = scalar_lea.vmem %s3, 64
      %v810 = vld [vmem:[%s809] sm:$0xf]
      %v811 = vld [vmem:[%s809 + $0x4] sm:$0xf]
      %v812 = vld [vmem:[%s809 + $0x8] sm:$0xf]
      %v813 = vld [vmem:[%s809 + $0xc] sm:$0xf]
      %v814 = vld [vmem:[%s809 + $0x10] sm:$0xf]
      %v815 = vld [vmem:[%s809 + $0x14] sm:$0xf]
      %v816 = vld [vmem:[%s809 + $0x18] sm:$0xf]
      %v817 = vld [vmem:[%s809 + $0x1c] sm:$0xf]
      %v818 = vld [vmem:[%s809 + $0x20] sm:$0xf]
      %v819 = vld [vmem:[%s809 + $0x24] sm:$0xf]
      %v820 = vld [vmem:[%s809 + $0x28] sm:$0xf]
      %v821 = vld [vmem:[%s809 + $0x2c] sm:$0xf]
      %v822 = vld [vmem:[%s809 + $0x30] sm:$0xf]
      %v823 = vld [vmem:[%s809 + $0x34] sm:$0xf]
      %v824 = vld [vmem:[%s809 + $0x38] sm:$0xf]
      %v825 = vld [vmem:[%s809 + $0x3c] sm:$0xf]
      %v842 = vunpack.c.l.b16 %v810
      %v843 = vunpack.c.l.b16 %v811
      %v844 = vunpack.c.l.b16 %v812
      %v845 = vunpack.c.l.b16 %v813
      %v846 = vunpack.c.l.b16 %v814
      %v847 = vunpack.c.l.b16 %v815
      %v848 = vunpack.c.l.b16 %v816
      %v849 = vunpack.c.l.b16 %v817
      %v850 = vunpack.c.l.b16 %v818
      %v851 = vunpack.c.l.b16 %v819
      %v852 = vunpack.c.l.b16 %v820
      %v853 = vunpack.c.l.b16 %v821
      %v854 = vunpack.c.l.b16 %v822
      %v855 = vunpack.c.l.b16 %v823
      %v856 = vunpack.c.l.b16 %v824
      %v857 = vunpack.c.l.b16 %v825
      %v858 = vpack.c.b16 %v843, %v842
      %v859 = vpack.c.b16 %v845, %v844
      %v860 = vpack.c.b16 %v847, %v846
      %v861 = vpack.c.b16 %v849, %v848
      %v862 = vpack.c.b16 %v851, %v850
      %v863 = vpack.c.b16 %v853, %v852
      %v864 = vpack.c.b16 %v855, %v854
      %v865 = vpack.c.b16 %v857, %v856
      %874 = vmatpush.bf16.msra.mxu0 %v865
      %875 = vmatpush.bf16.msra.mxu0 %v864
      %876 = vmatpush.bf16.msra.mxu0 %v863
      %877 = vmatpush.bf16.msra.mxu0 %v862
      %878 = vmatpush.bf16.msra.mxu0 %v861
      %879 = vmatpush.bf16.msra.mxu0 %v860
      %880 = vmatpush.bf16.msra.mxu0 %v859
      %881 = vmatpush.bf16.msra.mxu0 %v858
      %882 = vmatmul.bf16.gmra.mxu0 %v805
      %v883 = vpop.f32.mrf.mxu0
      %v884 = vadd.f32 0.0, %v883
      %v885 = vpop.f32.mrf.mxu0
      %v886 = vadd.f32 0.0, %v885
      %887 = vmatmul.bf16.gmra.mxu0 %v806
      %v888 = vpop.f32.mrf.mxu0
      %v889 = vadd.f32 0.0, %v888
      %v890 = vpop.f32.mrf.mxu0
      %v891 = vadd.f32 0.0, %v890
      %892 = vmatmul.bf16.gmra.mxu0 %v807
      %v893 = vpop.f32.mrf.mxu0
      %v894 = vadd.f32 0.0, %v893
      %v895 = vpop.f32.mrf.mxu0
      %v896 = vadd.f32 0.0, %v895
      %897 = vmatmul.bf16.gmra.mxu0 %v808
      %v898 = vpop.f32.mrf.mxu0
      %v899 = vadd.f32 0.0, %v898
      %v900 = vpop.f32.mrf.mxu0
      %v901 = vadd.f32 0.0, %v900
      %902 = vdwg.mxu0
      %v919 = vunpack.c.l.b16 %v781
      %v920 = vunpack.c.l.b16 %v782
      %v921 = vunpack.c.l.b16 %v783
      %v922 = vunpack.c.l.b16 %v784
      %v923 = vunpack.c.l.b16 %v785
      %v924 = vunpack.c.l.b16 %v786
      %v925 = vunpack.c.l.b16 %v787
      %v926 = vunpack.c.l.b16 %v788
      %v927 = vunpack.c.l.b16 %v789
      %v928 = vunpack.c.l.b16 %v790
      %v929 = vunpack.c.l.b16 %v791
      %v930 = vunpack.c.l.b16 %v792
      %v931 = vunpack.c.l.b16 %v793
      %v932 = vunpack.c.l.b16 %v794
      %v933 = vunpack.c.l.b16 %v795
      %v934 = vunpack.c.l.b16 %v796
      %v935 = vpack.c.b16 %v920, %v919
      %v936 = vpack.c.b16 %v922, %v921
      %v937 = vpack.c.b16 %v924, %v923
      %v938 = vpack.c.b16 %v926, %v925
      %v939 = vpack.c.b16 %v928, %v927
      %v940 = vpack.c.b16 %v930, %v929
      %v941 = vpack.c.b16 %v932, %v931
      %v942 = vpack.c.b16 %v934, %v933
      %951 = vmatpush.bf16.msra.mxu0 %v942
      %952 = vmatpush.bf16.msra.mxu0 %v941
      %953 = vmatpush.bf16.msra.mxu0 %v940
      %954 = vmatpush.bf16.msra.mxu0 %v939
      %955 = vmatpush.bf16.msra.mxu0 %v938
      %956 = vmatpush.bf16.msra.mxu0 %v937
      %957 = vmatpush.bf16.msra.mxu0 %v936
      %958 = vmatpush.bf16.msra.mxu0 %v935
      %959 = vmatmul.bf16.gmra.mxu0 %v777
      %v960 = vpop.f32.mrf.mxu0
      %v961 = vadd.f32 %v884, %v960
      %v962 = vpop.f32.mrf.mxu0
      %v963 = vadd.f32 %v886, %v962
      %964 = vmatmul.bf16.gmra.mxu0 %v778
      %v965 = vpop.f32.mrf.mxu0
      %v966 = vadd.f32 %v889, %v965
      %v967 = vpop.f32.mrf.mxu0
      %v968 = vadd.f32 %v891, %v967
      %969 = vmatmul.bf16.gmra.mxu0 %v779
      %v970 = vpop.f32.mrf.mxu0
      %v971 = vadd.f32 %v894, %v970
      %v972 = vpop.f32.mrf.mxu0
      %v973 = vadd.f32 %v896, %v972
      %974 = vmatmul.bf16.gmra.mxu0 %v780
      %v975 = vpop.f32.mrf.mxu0
      %v976 = vadd.f32 %v899, %v975
      %v977 = vpop.f32.mrf.mxu0
      %v978 = vadd.f32 %v901, %v977
      %979 = vdwg.mxu0
      %v980 = vld [vmem:[#allocation2 + $0x9] sm:$0xff]
      %v981 = vld [vmem:[#allocation2 + $0x21] sm:$0xff]
      %v982 = vld [vmem:[#allocation2 + $0x39] sm:$0xff]
      %v983 = vld [vmem:[#allocation2 + $0x51] sm:$0xff]
      %v984 = vld [vmem:[#allocation2 + $0x69] sm:$0xff]
      %v985 = vld [vmem:[#allocation2 + $0x81] sm:$0xff]
      %v986 = vld [vmem:[#allocation2 + $0x99] sm:$0xff]
      %v987 = vld [vmem:[#allocation2 + $0xb1] sm:$0xff]
      %v988 = vpack.c.bf16 %v981, %v980
      %v989 = vpack.c.bf16 %v983, %v982
      %v990 = vpack.c.bf16 %v985, %v984
      %v991 = vpack.c.bf16 %v987, %v986
      %s992 = scalar_lea.vmem %s3, 128
      %v993 = vld [vmem:[%s992] sm:$0xf]
      %v994 = vld [vmem:[%s992 + $0x4] sm:$0xf]
      %v995 = vld [vmem:[%s992 + $0x8] sm:$0xf]
      %v996 = vld [vmem:[%s992 + $0xc] sm:$0xf]
      %v997 = vld [vmem:[%s992 + $0x10] sm:$0xf]
      %v998 = vld [vmem:[%s992 + $0x14] sm:$0xf]
      %v999 = vld [vmem:[%s992 + $0x18] sm:$0xf]
      %v1000 = vld [vmem:[%s992 + $0x1c] sm:$0xf]
      %v1001 = vld [vmem:[%s992 + $0x20] sm:$0xf]
      %v1002 = vld [vmem:[%s992 + $0x24] sm:$0xf]
      %v1003 = vld [vmem:[%s992 + $0x28] sm:$0xf]
      %v1004 = vld [vmem:[%s992 + $0x2c] sm:$0xf]
      %v1005 = vld [vmem:[%s992 + $0x30] sm:$0xf]
      %v1006 = vld [vmem:[%s992 + $0x34] sm:$0xf]
      %v1007 = vld [vmem:[%s992 + $0x38] sm:$0xf]
      %v1008 = vld [vmem:[%s992 + $0x3c] sm:$0xf]
      %v1025 = vunpack.c.l.b16 %v993
      %v1026 = vunpack.c.l.b16 %v994
      %v1027 = vunpack.c.l.b16 %v995
      %v1028 = vunpack.c.l.b16 %v996
      %v1029 = vunpack.c.l.b16 %v997
      %v1030 = vunpack.c.l.b16 %v998
      %v1031 = vunpack.c.l.b16 %v999
      %v1032 = vunpack.c.l.b16 %v1000
      %v1033 = vunpack.c.l.b16 %v1001
      %v1034 = vunpack.c.l.b16 %v1002
      %v1035 = vunpack.c.l.b16 %v1003
      %v1036 = vunpack.c.l.b16 %v1004
      %v1037 = vunpack.c.l.b16 %v1005
      %v1038 = vunpack.c.l.b16 %v1006
      %v1039 = vunpack.c.l.b16 %v1007
      %v1040 = vunpack.c.l.b16 %v1008
      %v1041 = vpack.c.b16 %v1026, %v1025
      %v1042 = vpack.c.b16 %v1028, %v1027
      %v1043 = vpack.c.b16 %v1030, %v1029
      %v1044 = vpack.c.b16 %v1032, %v1031
      %v1045 = vpack.c.b16 %v1034, %v1033
      %v1046 = vpack.c.b16 %v1036, %v1035
      %v1047 = vpack.c.b16 %v1038, %v1037
      %v1048 = vpack.c.b16 %v1040, %v1039
      %1057 = vmatpush.bf16.msra.mxu0 %v1048
      %1058 = vmatpush.bf16.msra.mxu0 %v1047
      %1059 = vmatpush.bf16.msra.mxu0 %v1046
      %1060 = vmatpush.bf16.msra.mxu0 %v1045
      %1061 = vmatpush.bf16.msra.mxu0 %v1044
      %1062 = vmatpush.bf16.msra.mxu0 %v1043
      %1063 = vmatpush.bf16.msra.mxu0 %v1042
      %1064 = vmatpush.bf16.msra.mxu0 %v1041
      %1065 = vmatmul.bf16.gmra.mxu0 %v988
      %v1066 = vpop.f32.mrf.mxu0
      %v1067 = vadd.f32 0.0, %v1066
      %v1068 = vpop.f32.mrf.mxu0
      %v1069 = vadd.f32 0.0, %v1068
      %1070 = vmatmul.bf16.gmra.mxu0 %v989
      %v1071 = vpop.f32.mrf.mxu0
      %v1072 = vadd.f32 0.0, %v1071
      %v1073 = vpop.f32.mrf.mxu0
      %v1074 = vadd.f32 0.0, %v1073
      %1075 = vmatmul.bf16.gmra.mxu0 %v990
      %v1076 = vpop.f32.mrf.mxu0
      %v1077 = vadd.f32 0.0, %v1076
      %v1078 = vpop.f32.mrf.mxu0
      %v1079 = vadd.f32 0.0, %v1078
      %1080 = vmatmul.bf16.gmra.mxu0 %v991
      %v1081 = vpop.f32.mrf.mxu0
      %v1082 = vadd.f32 0.0, %v1081
      %v1083 = vpop.f32.mrf.mxu0
      %v1084 = vadd.f32 0.0, %v1083
      %1085 = vdwg.mxu0
      %v1086 = vadd.f32 %v961, %v1067
      %v1087 = vadd.f32 %v963, %v1069
      %v1088 = vadd.f32 %v966, %v1072
      %v1089 = vadd.f32 %v968, %v1074
      %v1090 = vadd.f32 %v971, %v1077
      %v1091 = vadd.f32 %v973, %v1079
      %v1092 = vadd.f32 %v976, %v1082
      %v1093 = vadd.f32 %v978, %v1084
      %v1094 = vld [vmem:[%s760 + $0x7] sm:$0xff]
      %v1095 = vld [vmem:[%s760 + $0x1f] sm:$0xff]
      %v1096 = vld [vmem:[%s760 + $0x37] sm:$0xff]
      %v1097 = vld [vmem:[%s760 + $0x4f] sm:$0xff]
      %v1098 = vld [vmem:[%s760 + $0x67] sm:$0xff]
      %v1099 = vld [vmem:[%s760 + $0x7f] sm:$0xff]
      %v1100 = vld [vmem:[%s760 + $0x97] sm:$0xff]
      %v1101 = vld [vmem:[%s760 + $0xaf] sm:$0xff]
      %v1102 = vpack.c.bf16 %v1095, %v1094
      %v1103 = vpack.c.bf16 %v1097, %v1096
      %v1104 = vpack.c.bf16 %v1099, %v1098
      %v1105 = vpack.c.bf16 %v1101, %v1100
      %s1106 = scalar_lea.vmem %s3, 192
      %v1107 = vld [vmem:[%s1106] sm:$0xf]
      %v1108 = vld [vmem:[%s1106 + $0x4] sm:$0xf]
      %v1109 = vld [vmem:[%s1106 + $0x8] sm:$0xf]
      %v1110 = vld [vmem:[%s1106 + $0xc] sm:$0xf]
      %v1111 = vld [vmem:[%s1106 + $0x10] sm:$0xf]
      %v1112 = vld [vmem:[%s1106 + $0x14] sm:$0xf]
      %v1113 = vld [vmem:[%s1106 + $0x18] sm:$0xf]
      %v1114 = vld [vmem:[%s1106 + $0x1c] sm:$0xf]
      %v1115 = vld [vmem:[%s1106 + $0x20] sm:$0xf]
      %v1116 = vld [vmem:[%s1106 + $0x24] sm:$0xf]
      %v1117 = vld [vmem:[%s1106 + $0x28] sm:$0xf]
      %v1118 = vld [vmem:[%s1106 + $0x2c] sm:$0xf]
      %v1119 = vld [vmem:[%s1106 + $0x30] sm:$0xf]
      %v1120 = vld [vmem:[%s1106 + $0x34] sm:$0xf]
      %v1121 = vld [vmem:[%s1106 + $0x38] sm:$0xf]
      %v1122 = vld [vmem:[%s1106 + $0x3c] sm:$0xf]
      %v1139 = vunpack.c.l.b16 %v1107
      %v1140 = vunpack.c.l.b16 %v1108
      %v1141 = vunpack.c.l.b16 %v1109
      %v1142 = vunpack.c.l.b16 %v1110
      %v1143 = vunpack.c.l.b16 %v1111
      %v1144 = vunpack.c.l.b16 %v1112
      %v1145 = vunpack.c.l.b16 %v1113
      %v1146 = vunpack.c.l.b16 %v1114
      %v1147 = vunpack.c.l.b16 %v1115
      %v1148 = vunpack.c.l.b16 %v1116
      %v1149 = vunpack.c.l.b16 %v1117
      %v1150 = vunpack.c.l.b16 %v1118
      %v1151 = vunpack.c.l.b16 %v1119
      %v1152 = vunpack.c.l.b16 %v1120
      %v1153 = vunpack.c.l.b16 %v1121
      %v1154 = vunpack.c.l.b16 %v1122
      %v1155 = vpack.c.b16 %v1140, %v1139
      %v1156 = vpack.c.b16 %v1142, %v1141
      %v1157 = vpack.c.b16 %v1144, %v1143
      %v1158 = vpack.c.b16 %v1146, %v1145
      %v1159 = vpack.c.b16 %v1148, %v1147
      %v1160 = vpack.c.b16 %v1150, %v1149
      %v1161 = vpack.c.b16 %v1152, %v1151
      %v1162 = vpack.c.b16 %v1154, %v1153
      %1171 = vmatpush.bf16.msra.mxu0 %v1162
      %1172 = vmatpush.bf16.msra.mxu0 %v1161
      %1173 = vmatpush.bf16.msra.mxu0 %v1160
      %1174 = vmatpush.bf16.msra.mxu0 %v1159
      %1175 = vmatpush.bf16.msra.mxu0 %v1158
      %1176 = vmatpush.bf16.msra.mxu0 %v1157
      %1177 = vmatpush.bf16.msra.mxu0 %v1156
      %1178 = vmatpush.bf16.msra.mxu0 %v1155
      %1179 = vmatmul.bf16.gmra.mxu0 %v1102
      %v1180 = vpop.f32.mrf.mxu0
      %v1181 = vadd.f32 0.0, %v1180
      %v1182 = vpop.f32.mrf.mxu0
      %v1183 = vadd.f32 0.0, %v1182
      %1184 = vmatmul.bf16.gmra.mxu0 %v1103
      %v1185 = vpop.f32.mrf.mxu0
      %v1186 = vadd.f32 0.0, %v1185
      %v1187 = vpop.f32.mrf.mxu0
      %v1188 = vadd.f32 0.0, %v1187
      %1189 = vmatmul.bf16.gmra.mxu0 %v1104
      %v1190 = vpop.f32.mrf.mxu0
      %v1191 = vadd.f32 0.0, %v1190
      %v1192 = vpop.f32.mrf.mxu0
      %v1193 = vadd.f32 0.0, %v1192
      %1194 = vmatmul.bf16.gmra.mxu0 %v1105
      %v1195 = vpop.f32.mrf.mxu0
      %v1196 = vadd.f32 0.0, %v1195
      %v1197 = vpop.f32.mrf.mxu0
      %v1198 = vadd.f32 0.0, %v1197
      %1199 = vdwg.mxu0
      %v1200 = vadd.f32 %v1086, %v1181
      %v1201 = vadd.f32 %v1087, %v1183
      %v1202 = vadd.f32 %v1088, %v1186
      %v1203 = vadd.f32 %v1089, %v1188
      %v1204 = vadd.f32 %v1090, %v1191
      %v1205 = vadd.f32 %v1091, %v1193
      %v1206 = vadd.f32 %v1092, %v1196
      %v1207 = vadd.f32 %v1093, %v1198
      %v1208 = vld [vmem:[%s760 + $0x8] sm:$0xff]
      %v1209 = vld [vmem:[%s760 + $0x20] sm:$0xff]
      %v1210 = vld [vmem:[%s760 + $0x38] sm:$0xff]
      %v1211 = vld [vmem:[%s760 + $0x50] sm:$0xff]
      %v1212 = vld [vmem:[%s760 + $0x68] sm:$0xff]
      %v1213 = vld [vmem:[%s760 + $0x80] sm:$0xff]
      %v1214 = vld [vmem:[%s760 + $0x98] sm:$0xff]
      %v1215 = vld [vmem:[%s760 + $0xb0] sm:$0xff]
      %v1216 = vpack.c.bf16 %v1209, %v1208
      %v1217 = vpack.c.bf16 %v1211, %v1210
      %v1218 = vpack.c.bf16 %v1213, %v1212
      %v1219 = vpack.c.bf16 %v1215, %v1214
      %s1220 = scalar_lea.vmem %s3, 256
      %v1221 = vld [vmem:[%s1220] sm:$0xf]
      %v1222 = vld [vmem:[%s1220 + $0x4] sm:$0xf]
      %v1223 = vld [vmem:[%s1220 + $0x8] sm:$0xf]
      %v1224 = vld [vmem:[%s1220 + $0xc] sm:$0xf]
      %v1225 = vld [vmem:[%s1220 + $0x10] sm:$0xf]
      %v1226 = vld [vmem:[%s1220 + $0x14] sm:$0xf]
      %v1227 = vld [vmem:[%s1220 + $0x18] sm:$0xf]
      %v1228 = vld [vmem:[%s1220 + $0x1c] sm:$0xf]
      %v1229 = vld [vmem:[%s1220 + $0x20] sm:$0xf]
      %v1230 = vld [vmem:[%s1220 + $0x24] sm:$0xf]
      %v1231 = vld [vmem:[%s1220 + $0x28] sm:$0xf]
      %v1232 = vld [vmem:[%s1220 + $0x2c] sm:$0xf]
      %v1233 = vld [vmem:[%s1220 + $0x30] sm:$0xf]
      %v1234 = vld [vmem:[%s1220 + $0x34] sm:$0xf]
      %v1235 = vld [vmem:[%s1220 + $0x38] sm:$0xf]
      %v1236 = vld [vmem:[%s1220 + $0x3c] sm:$0xf]
      %v1253 = vunpack.c.l.b16 %v1221
      %v1254 = vunpack.c.l.b16 %v1222
      %v1255 = vunpack.c.l.b16 %v1223
      %v1256 = vunpack.c.l.b16 %v1224
      %v1257 = vunpack.c.l.b16 %v1225
      %v1258 = vunpack.c.l.b16 %v1226
      %v1259 = vunpack.c.l.b16 %v1227
      %v1260 = vunpack.c.l.b16 %v1228
      %v1261 = vunpack.c.l.b16 %v1229
      %v1262 = vunpack.c.l.b16 %v1230
      %v1263 = vunpack.c.l.b16 %v1231
      %v1264 = vunpack.c.l.b16 %v1232
      %v1265 = vunpack.c.l.b16 %v1233
      %v1266 = vunpack.c.l.b16 %v1234
      %v1267 = vunpack.c.l.b16 %v1235
      %v1268 = vunpack.c.l.b16 %v1236
      %v1269 = vpack.c.b16 %v1254, %v1253
      %v1270 = vpack.c.b16 %v1256, %v1255
      %v1271 = vpack.c.b16 %v1258, %v1257
      %v1272 = vpack.c.b16 %v1260, %v1259
      %v1273 = vpack.c.b16 %v1262, %v1261
      %v1274 = vpack.c.b16 %v1264, %v1263
      %v1275 = vpack.c.b16 %v1266, %v1265
      %v1276 = vpack.c.b16 %v1268, %v1267
      %1285 = vmatpush.bf16.msra.mxu0 %v1276
      %1286 = vmatpush.bf16.msra.mxu0 %v1275
      %1287 = vmatpush.bf16.msra.mxu0 %v1274
      %1288 = vmatpush.bf16.msra.mxu0 %v1273
      %1289 = vmatpush.bf16.msra.mxu0 %v1272
      %1290 = vmatpush.bf16.msra.mxu0 %v1271
      %1291 = vmatpush.bf16.msra.mxu0 %v1270
      %1292 = vmatpush.bf16.msra.mxu0 %v1269
      %1293 = vmatmul.bf16.gmra.mxu0 %v1216
      %v1294 = vpop.f32.mrf.mxu0
      %v1295 = vadd.f32 0.0, %v1294
      %v1296 = vpop.f32.mrf.mxu0
      %v1297 = vadd.f32 0.0, %v1296
      %1298 = vmatmul.bf16.gmra.mxu0 %v1217
      %v1299 = vpop.f32.mrf.mxu0
      %v1300 = vadd.f32 0.0, %v1299
      %v1301 = vpop.f32.mrf.mxu0
      %v1302 = vadd.f32 0.0, %v1301
      %1303 = vmatmul.bf16.gmra.mxu0 %v1218
      %v1304 = vpop.f32.mrf.mxu0
      %v1305 = vadd.f32 0.0, %v1304
      %v1306 = vpop.f32.mrf.mxu0
      %v1307 = vadd.f32 0.0, %v1306
      %1308 = vmatmul.bf16.gmra.mxu0 %v1219
      %v1309 = vpop.f32.mrf.mxu0
      %v1310 = vadd.f32 0.0, %v1309
      %v1311 = vpop.f32.mrf.mxu0
      %v1312 = vadd.f32 0.0, %v1311
      %1313 = vdwg.mxu0
      %v1314 = vadd.f32 %v1200, %v1295
      %v1315 = vadd.f32 %v1201, %v1297
      %v1316 = vadd.f32 %v1202, %v1300
      %v1317 = vadd.f32 %v1203, %v1302
      %v1318 = vadd.f32 %v1204, %v1305
      %v1319 = vadd.f32 %v1205, %v1307
      %v1320 = vadd.f32 %v1206, %v1310
      %v1321 = vadd.f32 %v1207, %v1312
      %v1322 = vld [vmem:[%s760 + $0x9] sm:$0xff]
      %v1323 = vld [vmem:[%s760 + $0x21] sm:$0xff]
      %v1324 = vld [vmem:[%s760 + $0x39] sm:$0xff]
      %v1325 = vld [vmem:[%s760 + $0x51] sm:$0xff]
      %v1326 = vld [vmem:[%s760 + $0x69] sm:$0xff]
      %v1327 = vld [vmem:[%s760 + $0x81] sm:$0xff]
      %v1328 = vld [vmem:[%s760 + $0x99] sm:$0xff]
      %v1329 = vld [vmem:[%s760 + $0xb1] sm:$0xff]
      %v1330 = vpack.c.bf16 %v1323, %v1322
      %v1331 = vpack.c.bf16 %v1325, %v1324
      %v1332 = vpack.c.bf16 %v1327, %v1326
      %v1333 = vpack.c.bf16 %v1329, %v1328
      %s1334 = scalar_lea.vmem %s3, 320
      %v1335 = vld [vmem:[%s1334] sm:$0xf]
      %v1336 = vld [vmem:[%s1334 + $0x4] sm:$0xf]
      %v1337 = vld [vmem:[%s1334 + $0x8] sm:$0xf]
      %v1338 = vld [vmem:[%s1334 + $0xc] sm:$0xf]
      %v1339 = vld [vmem:[%s1334 + $0x10] sm:$0xf]
      %v1340 = vld [vmem:[%s1334 + $0x14] sm:$0xf]
      %v1341 = vld [vmem:[%s1334 + $0x18] sm:$0xf]
      %v1342 = vld [vmem:[%s1334 + $0x1c] sm:$0xf]
      %v1343 = vld [vmem:[%s1334 + $0x20] sm:$0xf]
      %v1344 = vld [vmem:[%s1334 + $0x24] sm:$0xf]
      %v1345 = vld [vmem:[%s1334 + $0x28] sm:$0xf]
      %v1346 = vld [vmem:[%s1334 + $0x2c] sm:$0xf]
      %v1347 = vld [vmem:[%s1334 + $0x30] sm:$0xf]
      %v1348 = vld [vmem:[%s1334 + $0x34] sm:$0xf]
      %v1349 = vld [vmem:[%s1334 + $0x38] sm:$0xf]
      %v1350 = vld [vmem:[%s1334 + $0x3c] sm:$0xf]
      %v1367 = vunpack.c.l.b16 %v1335
      %v1368 = vunpack.c.l.b16 %v1336
      %v1369 = vunpack.c.l.b16 %v1337
      %v1370 = vunpack.c.l.b16 %v1338
      %v1371 = vunpack.c.l.b16 %v1339
      %v1372 = vunpack.c.l.b16 %v1340
      %v1373 = vunpack.c.l.b16 %v1341
      %v1374 = vunpack.c.l.b16 %v1342
      %v1375 = vunpack.c.l.b16 %v1343
      %v1376 = vunpack.c.l.b16 %v1344
      %v1377 = vunpack.c.l.b16 %v1345
      %v1378 = vunpack.c.l.b16 %v1346
      %v1379 = vunpack.c.l.b16 %v1347
      %v1380 = vunpack.c.l.b16 %v1348
      %v1381 = vunpack.c.l.b16 %v1349
      %v1382 = vunpack.c.l.b16 %v1350
      %v1383 = vpack.c.b16 %v1368, %v1367
      %v1384 = vpack.c.b16 %v1370, %v1369
      %v1385 = vpack.c.b16 %v1372, %v1371
      %v1386 = vpack.c.b16 %v1374, %v1373
      %v1387 = vpack.c.b16 %v1376, %v1375
      %v1388 = vpack.c.b16 %v1378, %v1377
      %v1389 = vpack.c.b16 %v1380, %v1379
      %v1390 = vpack.c.b16 %v1382, %v1381
      %1399 = vmatpush.bf16.msra.mxu0 %v1390
      %1400 = vmatpush.bf16.msra.mxu0 %v1389
      %1401 = vmatpush.bf16.msra.mxu0 %v1388
      %1402 = vmatpush.bf16.msra.mxu0 %v1387
      %1403 = vmatpush.bf16.msra.mxu0 %v1386
      %1404 = vmatpush.bf16.msra.mxu0 %v1385
      %1405 = vmatpush.bf16.msra.mxu0 %v1384
      %1406 = vmatpush.bf16.msra.mxu0 %v1383
      %1407 = vmatmul.bf16.gmra.mxu0 %v1330
      %v1408 = vpop.f32.mrf.mxu0
      %v1409 = vadd.f32 0.0, %v1408
      %v1410 = vpop.f32.mrf.mxu0
      %v1411 = vadd.f32 0.0, %v1410
      %1412 = vmatmul.bf16.gmra.mxu0 %v1331
      %v1413 = vpop.f32.mrf.mxu0
      %v1414 = vadd.f32 0.0, %v1413
      %v1415 = vpop.f32.mrf.mxu0
      %v1416 = vadd.f32 0.0, %v1415
      %1417 = vmatmul.bf16.gmra.mxu0 %v1332
      %v1418 = vpop.f32.mrf.mxu0
      %v1419 = vadd.f32 0.0, %v1418
      %v1420 = vpop.f32.mrf.mxu0
      %v1421 = vadd.f32 0.0, %v1420
      %1422 = vmatmul.bf16.gmra.mxu0 %v1333
      %v1423 = vpop.f32.mrf.mxu0
      %v1424 = vadd.f32 0.0, %v1423
      %v1425 = vpop.f32.mrf.mxu0
      %v1426 = vadd.f32 0.0, %v1425
      %1427 = vdwg.mxu0
      %v1428 = vadd.f32 %v1314, %v1409
      %v1429 = vadd.f32 %v1315, %v1411
      %v1430 = vadd.f32 %v1316, %v1414
      %v1431 = vadd.f32 %v1317, %v1416
      %v1432 = vadd.f32 %v1318, %v1419
      %v1433 = vadd.f32 %v1319, %v1421
      %v1434 = vadd.f32 %v1320, %v1424
      %v1435 = vadd.f32 %v1321, %v1426
      %s1436 = scalar_lea.vmem [#allocation2], 48
      %v1437 = vld [vmem:[%s1436 + $0x7] sm:$0xff]
      %v1438 = vld [vmem:[%s1436 + $0x1f] sm:$0xff]
      %v1439 = vld [vmem:[%s1436 + $0x37] sm:$0xff]
      %v1440 = vld [vmem:[%s1436 + $0x4f] sm:$0xff]
      %v1441 = vld [vmem:[%s1436 + $0x67] sm:$0xff]
      %v1442 = vld [vmem:[%s1436 + $0x7f] sm:$0xff]
      %v1443 = vld [vmem:[%s1436 + $0x97] sm:$0xff]
      %v1444 = vld [vmem:[%s1436 + $0xaf] sm:$0xff]
      %v1445 = vpack.c.bf16 %v1438, %v1437
      %v1446 = vpack.c.bf16 %v1440, %v1439
      %v1447 = vpack.c.bf16 %v1442, %v1441
      %v1448 = vpack.c.bf16 %v1444, %v1443
      %s1449 = scalar_lea.vmem %s3, 384
      %v1450 = vld [vmem:[%s1449] sm:$0xf]
      %v1451 = vld [vmem:[%s1449 + $0x4] sm:$0xf]
      %v1452 = vld [vmem:[%s1449 + $0x8] sm:$0xf]
      %v1453 = vld [vmem:[%s1449 + $0xc] sm:$0xf]
      %v1454 = vld [vmem:[%s1449 + $0x10] sm:$0xf]
      %v1455 = vld [vmem:[%s1449 + $0x14] sm:$0xf]
      %v1456 = vld [vmem:[%s1449 + $0x18] sm:$0xf]
      %v1457 = vld [vmem:[%s1449 + $0x1c] sm:$0xf]
      %v1458 = vld [vmem:[%s1449 + $0x20] sm:$0xf]
      %v1459 = vld [vmem:[%s1449 + $0x24] sm:$0xf]
      %v1460 = vld [vmem:[%s1449 + $0x28] sm:$0xf]
      %v1461 = vld [vmem:[%s1449 + $0x2c] sm:$0xf]
      %v1462 = vld [vmem:[%s1449 + $0x30] sm:$0xf]
      %v1463 = vld [vmem:[%s1449 + $0x34] sm:$0xf]
      %v1464 = vld [vmem:[%s1449 + $0x38] sm:$0xf]
      %v1465 = vld [vmem:[%s1449 + $0x3c] sm:$0xf]
      %v1482 = vunpack.c.l.b16 %v1450
      %v1483 = vunpack.c.l.b16 %v1451
      %v1484 = vunpack.c.l.b16 %v1452
      %v1485 = vunpack.c.l.b16 %v1453
      %v1486 = vunpack.c.l.b16 %v1454
      %v1487 = vunpack.c.l.b16 %v1455
      %v1488 = vunpack.c.l.b16 %v1456
      %v1489 = vunpack.c.l.b16 %v1457
      %v1490 = vunpack.c.l.b16 %v1458
      %v1491 = vunpack.c.l.b16 %v1459
      %v1492 = vunpack.c.l.b16 %v1460
      %v1493 = vunpack.c.l.b16 %v1461
      %v1494 = vunpack.c.l.b16 %v1462
      %v1495 = vunpack.c.l.b16 %v1463
      %v1496 = vunpack.c.l.b16 %v1464
      %v1497 = vunpack.c.l.b16 %v1465
      %v1498 = vpack.c.b16 %v1483, %v1482
      %v1499 = vpack.c.b16 %v1485, %v1484
      %v1500 = vpack.c.b16 %v1487, %v1486
      %v1501 = vpack.c.b16 %v1489, %v1488
      %v1502 = vpack.c.b16 %v1491, %v1490
      %v1503 = vpack.c.b16 %v1493, %v1492
      %v1504 = vpack.c.b16 %v1495, %v1494
      %v1505 = vpack.c.b16 %v1497, %v1496
      %1514 = vmatpush.bf16.msra.mxu0 %v1505
      %1515 = vmatpush.bf16.msra.mxu0 %v1504
      %1516 = vmatpush.bf16.msra.mxu0 %v1503
      %1517 = vmatpush.bf16.msra.mxu0 %v1502
      %1518 = vmatpush.bf16.msra.mxu0 %v1501
      %1519 = vmatpush.bf16.msra.mxu0 %v1500
      %1520 = vmatpush.bf16.msra.mxu0 %v1499
      %1521 = vmatpush.bf16.msra.mxu0 %v1498
      %1522 = vmatmul.bf16.gmra.mxu0 %v1445
      %v1523 = vpop.f32.mrf.mxu0
      %v1524 = vadd.f32 0.0, %v1523
      %v1525 = vpop.f32.mrf.mxu0
      %v1526 = vadd.f32 0.0, %v1525
      %1527 = vmatmul.bf16.gmra.mxu0 %v1446
      %v1528 = vpop.f32.mrf.mxu0
      %v1529 = vadd.f32 0.0, %v1528
      %v1530 = vpop.f32.mrf.mxu0
      %v1531 = vadd.f32 0.0, %v1530
      %1532 = vmatmul.bf16.gmra.mxu0 %v1447
      %v1533 = vpop.f32.mrf.mxu0
      %v1534 = vadd.f32 0.0, %v1533
      %v1535 = vpop.f32.mrf.mxu0
      %v1536 = vadd.f32 0.0, %v1535
      %1537 = vmatmul.bf16.gmra.mxu0 %v1448
      %v1538 = vpop.f32.mrf.mxu0
      %v1539 = vadd.f32 0.0, %v1538
      %v1540 = vpop.f32.mrf.mxu0
      %v1541 = vadd.f32 0.0, %v1540
      %1542 = vdwg.mxu0
      %v1543 = vadd.f32 %v1428, %v1524
      %v1544 = vadd.f32 %v1429, %v1526
      %v1545 = vadd.f32 %v1430, %v1529
      %v1546 = vadd.f32 %v1431, %v1531
      %v1547 = vadd.f32 %v1432, %v1534
      %v1548 = vadd.f32 %v1433, %v1536
      %v1549 = vadd.f32 %v1434, %v1539
      %v1550 = vadd.f32 %v1435, %v1541
      %v1551 = vld [vmem:[%s1436 + $0x8] sm:$0xff]
      %v1552 = vld [vmem:[%s1436 + $0x20] sm:$0xff]
      %v1553 = vld [vmem:[%s1436 + $0x38] sm:$0xff]
      %v1554 = vld [vmem:[%s1436 + $0x50] sm:$0xff]
      %v1555 = vld [vmem:[%s1436 + $0x68] sm:$0xff]
      %v1556 = vld [vmem:[%s1436 + $0x80] sm:$0xff]
      %v1557 = vld [vmem:[%s1436 + $0x98] sm:$0xff]
      %v1558 = vld [vmem:[%s1436 + $0xb0] sm:$0xff]
      %v1559 = vpack.c.bf16 %v1552, %v1551
      %v1560 = vpack.c.bf16 %v1554, %v1553
      %v1561 = vpack.c.bf16 %v1556, %v1555
      %v1562 = vpack.c.bf16 %v1558, %v1557
      %s1563 = scalar_lea.vmem %s3, 448
      %v1564 = vld [vmem:[%s1563] sm:$0xf]
      %v1565 = vld [vmem:[%s1563 + $0x4] sm:$0xf]
      %v1566 = vld [vmem:[%s1563 + $0x8] sm:$0xf]
      %v1567 = vld [vmem:[%s1563 + $0xc] sm:$0xf]
      %v1568 = vld [vmem:[%s1563 + $0x10] sm:$0xf]
      %v1569 = vld [vmem:[%s1563 + $0x14] sm:$0xf]
      %v1570 = vld [vmem:[%s1563 + $0x18] sm:$0xf]
      %v1571 = vld [vmem:[%s1563 + $0x1c] sm:$0xf]
      %v1572 = vld [vmem:[%s1563 + $0x20] sm:$0xf]
      %v1573 = vld [vmem:[%s1563 + $0x24] sm:$0xf]
      %v1574 = vld [vmem:[%s1563 + $0x28] sm:$0xf]
      %v1575 = vld [vmem:[%s1563 + $0x2c] sm:$0xf]
      %v1576 = vld [vmem:[%s1563 + $0x30] sm:$0xf]
      %v1577 = vld [vmem:[%s1563 + $0x34] sm:$0xf]
      %v1578 = vld [vmem:[%s1563 + $0x38] sm:$0xf]
      %v1579 = vld [vmem:[%s1563 + $0x3c] sm:$0xf]
      %v1596 = vunpack.c.l.b16 %v1564
      %v1597 = vunpack.c.l.b16 %v1565
      %v1598 = vunpack.c.l.b16 %v1566
      %v1599 = vunpack.c.l.b16 %v1567
      %v1600 = vunpack.c.l.b16 %v1568
      %v1601 = vunpack.c.l.b16 %v1569
      %v1602 = vunpack.c.l.b16 %v1570
      %v1603 = vunpack.c.l.b16 %v1571
      %v1604 = vunpack.c.l.b16 %v1572
      %v1605 = vunpack.c.l.b16 %v1573
      %v1606 = vunpack.c.l.b16 %v1574
      %v1607 = vunpack.c.l.b16 %v1575
      %v1608 = vunpack.c.l.b16 %v1576
      %v1609 = vunpack.c.l.b16 %v1577
      %v1610 = vunpack.c.l.b16 %v1578
      %v1611 = vunpack.c.l.b16 %v1579
      %v1612 = vpack.c.b16 %v1597, %v1596
      %v1613 = vpack.c.b16 %v1599, %v1598
      %v1614 = vpack.c.b16 %v1601, %v1600
      %v1615 = vpack.c.b16 %v1603, %v1602
      %v1616 = vpack.c.b16 %v1605, %v1604
      %v1617 = vpack.c.b16 %v1607, %v1606
      %v1618 = vpack.c.b16 %v1609, %v1608
      %v1619 = vpack.c.b16 %v1611, %v1610
      %1628 = vmatpush.bf16.msra.mxu0 %v1619
      %1629 = vmatpush.bf16.msra.mxu0 %v1618
      %1630 = vmatpush.bf16.msra.mxu0 %v1617
      %1631 = vmatpush.bf16.msra.mxu0 %v1616
      %1632 = vmatpush.bf16.msra.mxu0 %v1615
      %1633 = vmatpush.bf16.msra.mxu0 %v1614
      %1634 = vmatpush.bf16.msra.mxu0 %v1613
      %1635 = vmatpush.bf16.msra.mxu0 %v1612
      %1636 = vmatmul.bf16.gmra.mxu0 %v1559
      %v1637 = vpop.f32.mrf.mxu0
      %v1638 = vadd.f32 0.0, %v1637
      %v1639 = vpop.f32.mrf.mxu0
      %v1640 = vadd.f32 0.0, %v1639
      %1641 = vmatmul.bf16.gmra.mxu0 %v1560
      %v1642 = vpop.f32.mrf.mxu0
      %v1643 = vadd.f32 0.0, %v1642
      %v1644 = vpop.f32.mrf.mxu0
      %v1645 = vadd.f32 0.0, %v1644
      %1646 = vmatmul.bf16.gmra.mxu0 %v1561
      %v1647 = vpop.f32.mrf.mxu0
      %v1648 = vadd.f32 0.0, %v1647
      %v1649 = vpop.f32.mrf.mxu0
      %v1650 = vadd.f32 0.0, %v1649
      %1651 = vmatmul.bf16.gmra.mxu0 %v1562
      %v1652 = vpop.f32.mrf.mxu0
      %v1653 = vadd.f32 0.0, %v1652
      %v1654 = vpop.f32.mrf.mxu0
      %v1655 = vadd.f32 0.0, %v1654
      %1656 = vdwg.mxu0
      %v1657 = vadd.f32 %v1543, %v1638
      %v1658 = vadd.f32 %v1544, %v1640
      %v1659 = vadd.f32 %v1545, %v1643
      %v1660 = vadd.f32 %v1546, %v1645
      %v1661 = vadd.f32 %v1547, %v1648
      %v1662 = vadd.f32 %v1548, %v1650
      %v1663 = vadd.f32 %v1549, %v1653
      %v1664 = vadd.f32 %v1550, %v1655
      %v1665 = vld [vmem:[%s1436 + $0x9] sm:$0xff]
      %v1666 = vld [vmem:[%s1436 + $0x21] sm:$0xff]
      %v1667 = vld [vmem:[%s1436 + $0x39] sm:$0xff]
      %v1668 = vld [vmem:[%s1436 + $0x51] sm:$0xff]
      %v1669 = vld [vmem:[%s1436 + $0x69] sm:$0xff]
      %v1670 = vld [vmem:[%s1436 + $0x81] sm:$0xff]
      %v1671 = vld [vmem:[%s1436 + $0x99] sm:$0xff]
      %v1672 = vld [vmem:[%s1436 + $0xb1] sm:$0xff]
      %v1673 = vpack.c.bf16 %v1666, %v1665
      %v1674 = vpack.c.bf16 %v1668, %v1667
      %v1675 = vpack.c.bf16 %v1670, %v1669
      %v1676 = vpack.c.bf16 %v1672, %v1671
      %s1677 = scalar_lea.vmem %s3, 512
      %v1678 = vld [vmem:[%s1677] sm:$0xf]
      %v1679 = vld [vmem:[%s1677 + $0x4] sm:$0xf]
      %v1680 = vld [vmem:[%s1677 + $0x8] sm:$0xf]
      %v1681 = vld [vmem:[%s1677 + $0xc] sm:$0xf]
      %v1682 = vld [vmem:[%s1677 + $0x10] sm:$0xf]
      %v1683 = vld [vmem:[%s1677 + $0x14] sm:$0xf]
      %v1684 = vld [vmem:[%s1677 + $0x18] sm:$0xf]
      %v1685 = vld [vmem:[%s1677 + $0x1c] sm:$0xf]
      %v1686 = vld [vmem:[%s1677 + $0x20] sm:$0xf]
      %v1687 = vld [vmem:[%s1677 + $0x24] sm:$0xf]
      %v1688 = vld [vmem:[%s1677 + $0x28] sm:$0xf]
      %v1689 = vld [vmem:[%s1677 + $0x2c] sm:$0xf]
      %v1690 = vld [vmem:[%s1677 + $0x30] sm:$0xf]
      %v1691 = vld [vmem:[%s1677 + $0x34] sm:$0xf]
      %v1692 = vld [vmem:[%s1677 + $0x38] sm:$0xf]
      %v1693 = vld [vmem:[%s1677 + $0x3c] sm:$0xf]
      %v1710 = vunpack.c.l.b16 %v1678
      %v1711 = vunpack.c.l.b16 %v1679
      %v1712 = vunpack.c.l.b16 %v1680
      %v1713 = vunpack.c.l.b16 %v1681
      %v1714 = vunpack.c.l.b16 %v1682
      %v1715 = vunpack.c.l.b16 %v1683
      %v1716 = vunpack.c.l.b16 %v1684
      %v1717 = vunpack.c.l.b16 %v1685
      %v1718 = vunpack.c.l.b16 %v1686
      %v1719 = vunpack.c.l.b16 %v1687
      %v1720 = vunpack.c.l.b16 %v1688
      %v1721 = vunpack.c.l.b16 %v1689
      %v1722 = vunpack.c.l.b16 %v1690
      %v1723 = vunpack.c.l.b16 %v1691
      %v1724 = vunpack.c.l.b16 %v1692
      %v1725 = vunpack.c.l.b16 %v1693
      %v1726 = vpack.c.b16 %v1711, %v1710
      %v1727 = vpack.c.b16 %v1713, %v1712
      %v1728 = vpack.c.b16 %v1715, %v1714
      %v1729 = vpack.c.b16 %v1717, %v1716
      %v1730 = vpack.c.b16 %v1719, %v1718
      %v1731 = vpack.c.b16 %v1721, %v1720
      %v1732 = vpack.c.b16 %v1723, %v1722
      %v1733 = vpack.c.b16 %v1725, %v1724
      %1742 = vmatpush.bf16.msra.mxu0 %v1733
      %1743 = vmatpush.bf16.msra.mxu0 %v1732
      %1744 = vmatpush.bf16.msra.mxu0 %v1731
      %1745 = vmatpush.bf16.msra.mxu0 %v1730
      %1746 = vmatpush.bf16.msra.mxu0 %v1729
      %1747 = vmatpush.bf16.msra.mxu0 %v1728
      %1748 = vmatpush.bf16.msra.mxu0 %v1727
      %1749 = vmatpush.bf16.msra.mxu0 %v1726
      %1750 = vmatmul.bf16.gmra.mxu0 %v1673
      %v1751 = vpop.f32.mrf.mxu0
      %v1752 = vadd.f32 0.0, %v1751
      %v1753 = vpop.f32.mrf.mxu0
      %v1754 = vadd.f32 0.0, %v1753
      %1755 = vmatmul.bf16.gmra.mxu0 %v1674
      %v1756 = vpop.f32.mrf.mxu0
      %v1757 = vadd.f32 0.0, %v1756
      %v1758 = vpop.f32.mrf.mxu0
      %v1759 = vadd.f32 0.0, %v1758
      %1760 = vmatmul.bf16.gmra.mxu0 %v1675
      %v1761 = vpop.f32.mrf.mxu0
      %v1762 = vadd.f32 0.0, %v1761
      %v1763 = vpop.f32.mrf.mxu0
      %v1764 = vadd.f32 0.0, %v1763
      %1765 = vmatmul.bf16.gmra.mxu0 %v1676
      %v1766 = vpop.f32.mrf.mxu0
      %v1767 = vadd.f32 0.0, %v1766
      %v1768 = vpop.f32.mrf.mxu0
      %v1769 = vadd.f32 0.0, %v1768
      %1770 = vdwg.mxu0
      %v1771 = vadd.f32 %v1657, %v1752
      %v1772 = vadd.f32 %v1658, %v1754
      %v1773 = vadd.f32 %v1659, %v1757
      %v1774 = vadd.f32 %v1660, %v1759
      %v1775 = vadd.f32 %v1661, %v1762
      %v1776 = vadd.f32 %v1662, %v1764
      %v1777 = vadd.f32 %v1663, %v1767
      %v1778 = vadd.f32 %v1664, %v1769
      %v1779 = vld [vmem:[%s4] sm:$0x1]
      %v1781 = vperm.slane %v1779, 0
      %v1783 = vadd.f32 %v1771, %v1781
      %v1784 = vadd.f32 %v1772, %v1781
      %v1785 = vadd.f32 %v1773, %v1781
      %v1786 = vadd.f32 %v1774, %v1781
      %v1787 = vadd.f32 %v1775, %v1781
      %v1788 = vadd.f32 %v1776, %v1781
      %v1789 = vadd.f32 %v1777, %v1781
      %v1790 = vadd.f32 %v1778, %v1781
      %vm1791 = vcmp.gt.f32.partialorder %v1783, 0.0
      %vm1792 = vcmp.gt.f32.partialorder %v1784, 0.0
      %vm1793 = vcmp.gt.f32.partialorder %v1785, 0.0
      %vm1794 = vcmp.gt.f32.partialorder %v1786, 0.0
      %vm1795 = vcmp.gt.f32.partialorder %v1787, 0.0
      %vm1796 = vcmp.gt.f32.partialorder %v1788, 0.0
      %vm1797 = vcmp.gt.f32.partialorder %v1789, 0.0
      %vm1798 = vcmp.gt.f32.partialorder %v1790, 0.0
      %s1799 = sld [smem:[#allocation4]]
      %v1800 = vstv %s1799
      %v1801 = vmul.f32 %v1800, %v1783
      %v1802 = vmul.f32 %v1800, %v1784
      %v1803 = vmul.f32 %v1800, %v1785
      %v1804 = vmul.f32 %v1800, %v1786
      %v1805 = vmul.f32 %v1800, %v1787
      %v1806 = vmul.f32 %v1800, %v1788
      %v1807 = vmul.f32 %v1800, %v1789
      %v1808 = vmul.f32 %v1800, %v1790
      %v1809 = vsel %vm1791, %v1783, %v1801
      %v1810 = vsel %vm1792, %v1784, %v1802
      %v1811 = vsel %vm1793, %v1785, %v1803
      %v1812 = vsel %vm1794, %v1786, %v1804
      %v1813 = vsel %vm1795, %v1787, %v1805
      %v1814 = vsel %vm1796, %v1788, %v1806
      %v1815 = vsel %vm1797, %v1789, %v1807
      %v1816 = vsel %vm1798, %v1790, %v1808
      %1817 = vst [vmem:[%s280] sm:$0xff] %v1809
      %1818 = vst [vmem:[%s280 + $0x8] sm:$0xff] %v1810
      %1819 = vst [vmem:[%s280 + $0x10] sm:$0xff] %v1811
      %1820 = vst [vmem:[%s280 + $0x18] sm:$0xff] %v1812
      %1821 = vst [vmem:[%s280 + $0x20] sm:$0xff] %v1813
      %1822 = vst [vmem:[%s280 + $0x28] sm:$0xff] %v1814
      %1823 = vst [vmem:[%s280 + $0x30] sm:$0xff] %v1815
      %1824 = vst [vmem:[%s280 + $0x38] sm:$0xff] %v1816
      %p1825 = scmp.lt.s32.totalorder %s20, 1
      %s1826 = scalar_select %p1825, %s20, 1
      %s1827 = smul.addr %s1826, 8
      %s1828 = smul.addr %s1827, 8
      %s1829 = scalar_lea.vmem %s7, %s1828
      // Predicated region
      $region49: #{conv2d_down.1} parent=47 // pred_check
        %p1830 = pneg %p190
      $region50: #{conv2d_down.1} parent=47 // pred_check_branch
        %1832 = sbr.rel (%p1830) target = $region52
      $region51: #{conv2d_down.1} parent=47 // pred_region
        _
      $region52: #{conv2d_down.1} parent=47 // pred_fallthru
        _
    $region48: #{conv2d_down.1} parent=5 // pred_fallthru
      _
    %p1833 = scmp.le.s32.totalorder 2, %s15
    // Predicated region
    $region53: #{conv2d_down.1} parent=5 // pred_check
      %p1834 = pneg %p1833
    $region54: #{conv2d_down.1} parent=5 // pred_check_branch
      %1836 = sbr.rel (%p1834) target = $region56
    $region55: #{conv2d_down.1} parent=5 // pred_region
      %s1837 = ssub.s32 %s15, 2
      // Predicated region
      $region57: #{conv2d_down.1} parent=55 // pred_check
        %p1838 = pneg %p196
      $region58: #{conv2d_down.1} parent=55 // pred_check_branch
        %1840 = sbr.rel (%p1838) target = $region60
      $region59: #{conv2d_down.1} parent=55 // pred_region
        %p1841 = scmp.lt.s32.totalorder %s21, 1
        %s1842 = scalar_select %p1841, %s21, 1
        %s1843 = smul.addr %s1842, 8
        %s1844 = smul.addr %s1843, 8
        %s1845 = scalar_lea.vmem %s7, %s1844
      $region60: #{conv2d_down.1} parent=55 // pred_fallthru
        _
    $region56: #{conv2d_down.1} parent=5 // pred_fallthru
      _
  $region6: #{conv2d_down.1} parent=0 // loop_footer
    %s19 = sadd.s32 1, %s15
  $region7: #{conv2d_down.1} parent=0 // loop_footer_branch
    %14 = sbr.rel target = $region3
  $region8: #{conv2d_down.1} parent=0 // loop_exit
    _

</llo_original>
